<compile_context>
chip_gen: v7x
topology: tpu7x:2x2x1
jax: 0.10.0
libtpu: 0.0.40
codegen_flags: <defaults>
</compile_context>

<pallas_src>
import jax
import jax.numpy as jnp
import numpy as np
from jax.experimental import pallas as pl
from jax.experimental.pallas import tpu as pltpu

# ---- static configuration (LambdaBottleneck(32, 8, stride=1)) ----
PLANES = 8
EXPANSION = 4
IN_PLANES = EXPANSION * PLANES      # 32 -> identity shortcut branch
HEADS = 4
KK = 16
UU = 1
MM = 23
PAD = (MM - 1) // 2
VV = PLANES // HEADS                # 2
BATCH = 2
H = W = 8
N = H * W
OUT_C = EXPANSION * PLANES
QKV = HEADS * KK + KK * UU + VV * UU   # 64 + 16 + 2 = 82

FUSED_ORDER = ['w1', 'b1', 'wqkv', 'bqkv', 'ea', 's', 'b2', 'w3', 'b3']


def _bottleneck_kernel(x_ref,
                       w1_ref, b1_ref,
                       wqkv_ref, bqkv_ref,
                       ea_ref, s_ref, b2_ref,
                       w3_ref, b3_ref,
                       o_ref):
    x = x_ref[...]                                                   # (B*N, 32)

    # conv1 (1x1, bn1 scale folded into the weight) + bias + relu
    h1 = jnp.dot(x, w1_ref[...], preferred_element_type=jnp.float32) + b1_ref[...]
    h1 = jnp.maximum(h1, 0.0)                                        # (B*N, 8)

    # fused q|k|v 1x1 projections (bn scales folded into the weights)
    proj = (jnp.dot(h1, wqkv_ref[...], preferred_element_type=jnp.float32)
            + bqkv_ref[...])                                         # (B*N, 82)

    q_all = proj[:, :HEADS * KK]                                     # (B*N, 64)

    # both batches' value channels packed on lanes: column = b*VV + v
    vals_cat = jnp.concatenate(
        [proj[b * N:(b + 1) * N, HEADS * KK + KK:QKV] for b in range(BATCH)],
        axis=1)                                                      # (N, B*VV)

    # position lambdas for BOTH batches with one K=N contraction against the
    # precomputed bf16 position matrix ea[n', n*KK + k]:
    #   r_t[b*VV + v, n*KK + k] = sum_{n'} E[k, n, n'] * vals[b, n', v]
    r_t = jax.lax.dot_general(
        vals_cat.astype(jnp.bfloat16), ea_ref[...],
        (((0,), (0,)), ((), ())),
        preferred_element_type=jnp.float32)                          # (B*VV, N*KK)
    lam_p = r_t.reshape(BATCH * VV, N, KK)                           # (B*VV, N, KK)

    # content lambdas + assembly of the full (content + position) lambdas
    lp_rows = []
    for b in range(BATCH):                                           # static (B=2)
        keys = proj[b * N:(b + 1) * N, HEADS * KK:HEADS * KK + KK]   # (N, 16)
        vals = proj[b * N:(b + 1) * N, HEADS * KK + KK:QKV]          # (N, 2)

        # softmax over spatial positions, normalization deferred past the
        # contraction; the reciprocal goes to the EUP slot.
        keys = keys - jnp.max(keys, axis=0, keepdims=True)
        ek = jnp.exp(keys)                                           # (N, 16)
        inv = pl.reciprocal(jnp.sum(ek, axis=0, keepdims=True), approx=True)
        lam_c = jax.lax.dot_general(vals, ek, (((0,), (0,)), ((), ())),
                                    preferred_element_type=jnp.float32) * inv  # (VV,16)

        lp_rows.append(jnp.concatenate(
            [lam_p[b * VV + 0] + lam_c[0:1, :],
             lam_p[b * VV + 1] + lam_c[1:2, :]], axis=1))            # (N, VV*KK)
    lp_full = jnp.concatenate(lp_rows, axis=0)                       # (B*N, 32)

    # apply lambdas to all heads (lane-tiled) and contract over k with ONE
    # matmul against the static (bn2-scaled) head/value selection matrix;
    # output channel order is h*VV + v.
    lp0 = jnp.concatenate([lp_full[:, :KK]] * HEADS, axis=1)         # (B*N, 64)
    lp1 = jnp.concatenate([lp_full[:, KK:2 * KK]] * HEADS, axis=1)   # (B*N, 64)
    prod = jnp.concatenate([q_all * lp0, q_all * lp1], axis=1)       # (B*N, 128)
    y = jnp.dot(prod, s_ref[...], preferred_element_type=jnp.float32) + b2_ref[...]
    h2 = jnp.maximum(y, 0.0)                                         # (B*N, 8)

    # conv3 (1x1, bn3 scale folded) + bias, identity shortcut, relu
    h3 = jnp.dot(h2, w3_ref[...], preferred_element_type=jnp.float32) + b3_ref[...]
    o_ref[...] = jnp.maximum(h3 + x, 0.0)


def lambda_bottleneck(x_nchw, fused):
    B, Cin, Hh, Ww = x_nchw.shape
    assert (B, Cin, Hh, Ww) == (BATCH, IN_PLANES, H, W)
    n = Hh * Ww
    # NCHW -> (B*N, C)
    x2d = jnp.transpose(x_nchw, (0, 2, 3, 1)).reshape(B * n, Cin)

    args = [x2d] + [fused[k] for k in FUSED_ORDER]
    in_specs = [pl.BlockSpec(a.shape, lambda i: (0, 0)) for a in args]

    out = pl.pallas_call(
        _bottleneck_kernel,
        out_shape=jax.ShapeDtypeStruct((B * n, OUT_C), jnp.float32),
        grid=(1,),
        in_specs=in_specs,
        out_specs=pl.BlockSpec((B * n, OUT_C), lambda i: (0, 0)),
        compiler_params=pltpu.CompilerParams(
            dimension_semantics=("arbitrary",)),
    )(*args)

    return jnp.transpose(out.reshape(B, Hh, Ww, OUT_C), (0, 3, 1, 2))


def build_position_matrix(emb, Hh, Ww):
    """E[k, n, n'] = emb[k,0,0, i'-i+PAD, j'-j+PAD] (zero outside kernel support).
    Pure parameter rearrangement; makes F.conv3d(values, embedding) a matmul."""
    emb2d = emb[:, 0, 0]                                   # (KK, MM, MM)
    ii = jnp.arange(Hh)
    jj = jnp.arange(Ww)
    di = ii[None, :] - ii[:, None] + PAD                   # (Hh, Hh): i' - i + PAD
    dj = jj[None, :] - jj[:, None] + PAD
    vi = (di >= 0) & (di < MM)
    vj = (dj >= 0) & (dj < MM)
    dic = jnp.clip(di, 0, MM - 1)
    djc = jnp.clip(dj, 0, MM - 1)
    A = dic[:, None, :, None]                              # (Hh,1,Hh,1)
    Bx = djc[None, :, None, :]                             # (1,Ww,1,Ww)
    E = emb2d[:, A, Bx]                                    # (KK, Hh, Ww, Hh, Ww)
    mask = (vi[:, None, :, None] & vj[None, :, None, :]).astype(jnp.float32)
    E = E * mask[None]
    return E.reshape(KK, Hh * Ww, Hh * Ww).astype(jnp.float32)


def init_params(key):
    ks = jax.random.split(key, 16)

    def nrm(k, shape, scale):
        return (scale * jax.random.normal(k, shape)).astype(jnp.float32)

    p = {}
    p['w1'] = nrm(ks[0], (IN_PLANES, PLANES), 0.2)
    p['wq'] = nrm(ks[1], (PLANES, KK * HEADS), 0.2)
    p['wk'] = nrm(ks[2], (PLANES, KK * UU), 0.2)
    p['wv'] = nrm(ks[3], (PLANES, VV * UU), 0.2)
    p['w3'] = nrm(ks[4], (PLANES, OUT_C), 0.2)
    p['emb'] = nrm(ks[5], (KK, UU, 1, MM, MM), 0.1)

    def bn_fold(kg, kb, c):
        gamma = 1.0 + 0.1 * jax.random.normal(kg, (c,))
        beta = 0.1 * jax.random.normal(kb, (c,))
        mean = jnp.zeros((c,))
        var = jnp.ones((c,))
        eps = 1e-5
        scale = gamma / jnp.sqrt(var + eps)
        bias = beta - mean * scale
        return (scale.reshape(1, c).astype(jnp.float32),
                bias.reshape(1, c).astype(jnp.float32))

    p['s1'], p['b1'] = bn_fold(ks[6], ks[7], PLANES)
    p['sq'], p['bq'] = bn_fold(ks[8], ks[9], KK * HEADS)
    p['sv'], p['bv'] = bn_fold(ks[10], ks[11], VV * UU)
    p['s2'], p['b2'] = bn_fold(ks[12], ks[13], PLANES)
    p['s3'], p['b3'] = bn_fold(ks[14], ks[15], OUT_C)
    return p


def fuse_params(p):
    """Wrapper-side weight fusion: BN scales folded into weights, q|k|v packed,
    position matrix (bf16, contraction-ready layout) and head-selection matrix
    precomputed."""
    f = {}
    f['w1'] = p['w1'] * p['s1']                                   # (32, 8)
    f['b1'] = p['b1']                                             # (1, 8)
    f['wqkv'] = jnp.concatenate(
        [p['wq'] * p['sq'], p['wk'], p['wv'] * p['sv']], axis=1)  # (8, 82)
    f['bqkv'] = jnp.concatenate(
        [p['bq'], jnp.zeros((1, KK * UU), jnp.float32), p['bv']], axis=1)  # (1, 82)

    # position matrix in contraction-ready layout: ea[n', n*KK + k] = E[k,n,n']
    E = build_position_matrix(p['emb'], H, W)                     # (KK, N, N)
    f['ea'] = jnp.transpose(E, (2, 1, 0)).reshape(N, N * KK).astype(jnp.bfloat16)

    # head/value selection matrix, bn2 scale folded in:
    # sel[v*HEADS*KK + h*KK + k, h*VV + v] = s2[h*VV + v]
    sel = np.zeros((VV * HEADS * KK, PLANES), np.float32)
    for v in range(VV):
        for hh in range(HEADS):
            for k in range(KK):
                sel[v * HEADS * KK + hh * KK + k, hh * VV + v] = 1.0
    f['s'] = jnp.asarray(sel) * p['s2']                           # (128, 8)
    f['b2'] = p['b2']                                             # (1, 8)

    f['w3'] = p['w3'] * p['s3']                                   # (8, 32)
    f['b3'] = p['b3']                                             # (1, 32)
    return f


def reference_forward(x_nchw, p):
    """Pure-JAX reference at highest matmul precision (uses lax.conv for the
    local-context lambda, independently of the kernel's position matrix)."""
    with jax.default_matmul_precision('highest'):
        B, Cin, Hh, Ww = x_nchw.shape
        n = Hh * Ww
        xf = jnp.transpose(x_nchw, (0, 2, 3, 1)).reshape(B, n, Cin)
        h1 = jax.nn.relu((xf @ p['w1']) * p['s1'] + p['b1'])
        q = (h1 @ p['wq']) * p['sq'] + p['bq']
        keys = h1 @ p['wk']
        sm = jax.nn.softmax(keys, axis=1)
        vals = (h1 @ p['wv']) * p['sv'] + p['bv']
        lam_c = jnp.einsum('bnk,bnv->bkv', sm, vals)
        qh = q.reshape(B, n, HEADS, KK)
        y_c = jnp.einsum('bnhk,bkv->bnhv', qh, lam_c)
        vmap = jnp.transpose(vals, (0, 2, 1)).reshape(B * VV, 1, Hh, Ww)
        emb2d = p['emb'][:, 0, 0][:, None]                       # (KK,1,MM,MM)
        lp = jax.lax.conv_general_dilated(
            vmap, emb2d, (1, 1), ((PAD, PAD), (PAD, PAD)),
            dimension_numbers=('NCHW', 'OIHW', 'NCHW'))          # (B*VV, KK, Hh, Ww)
        lp = jnp.transpose(lp.reshape(B, VV, KK, n), (0, 3, 2, 1))  # (B,n,KK,VV)
        y_p = jnp.einsum('bnhk,bnkv->bnhv', qh, lp)
        y = (y_c + y_p).reshape(B, n, PLANES)
        h2 = jax.nn.relu(y * p['s2'] + p['b2'])
        h3 = (h2 @ p['w3']) * p['s3'] + p['b3']
        out = jax.nn.relu(h3 + xf)
        return jnp.transpose(out.reshape(B, Hh, Ww, OUT_C), (0, 3, 1, 2))


if __name__ == "__main__":
    key = jax.random.PRNGKey(0)
    kx, kp = jax.random.split(key)
    x = jax.random.normal(kx, (BATCH, IN_PLANES, H, W), dtype=jnp.float32)
    params = init_params(kp)
    fused = fuse_params(params)

    out = jax.block_until_ready(lambda_bottleneck(x, fused))
    ref = jax.block_until_ready(reference_forward(x, params))

    assert out.shape == (BATCH, OUT_C, H, W)
    # Kernel matmuls run at native MXU (bf16-operand) precision and the
    # position matrix is stored in bf16; the reference is computed at highest
    # precision, hence the slightly looser atol.
    np.testing.assert_allclose(np.asarray(out), np.asarray(ref), rtol=2e-2, atol=3e-2)
    print("KERNEL_OK")
</pallas_src>

<mosaic_0001>
module attributes {stable_mosaic.version = 11 : i64} {
  func.func @_bottleneck_kernel(%arg0: i32, %arg1: memref<128x32xf32, #tpu.memory_space<vmem>>, %arg2: memref<32x8xf32, #tpu.memory_space<vmem>>, %arg3: memref<1x8xf32, #tpu.memory_space<vmem>>, %arg4: memref<8x82xf32, #tpu.memory_space<vmem>>, %arg5: memref<1x82xf32, #tpu.memory_space<vmem>>, %arg6: memref<64x1024xbf16, #tpu.memory_space<vmem>>, %arg7: memref<128x8xf32, #tpu.memory_space<vmem>>, %arg8: memref<1x8xf32, #tpu.memory_space<vmem>>, %arg9: memref<8x32xf32, #tpu.memory_space<vmem>>, %arg10: memref<1x32xf32, #tpu.memory_space<vmem>>, %arg11: memref<128x32xf32, #tpu.memory_space<vmem>>) attributes {dimension_semantics = [#tpu.dimension_semantics<arbitrary>], iteration_bounds = array<i64: 1>, scalar_prefetch = 0 : i64, scratch_operands = 0 : i64, tpu.core_type = #tpu.core_type<tc>, window_params = [{pipeline_mode = #tpu.pipeline_mode<synchronous>, transform_indices = @transform_0, window_bounds = array<i64: 128, 32>}, {pipeline_mode = #tpu.pipeline_mode<synchronous>, transform_indices = @transform_1, window_bounds = array<i64: 32, 8>}, {pipeline_mode = #tpu.pipeline_mode<synchronous>, transform_indices = @transform_2, window_bounds = array<i64: 1, 8>}, {pipeline_mode = #tpu.pipeline_mode<synchronous>, transform_indices = @transform_3, window_bounds = array<i64: 8, 82>}, {pipeline_mode = #tpu.pipeline_mode<synchronous>, transform_indices = @transform_4, window_bounds = array<i64: 1, 82>}, {pipeline_mode = #tpu.pipeline_mode<synchronous>, transform_indices = @transform_5, window_bounds = array<i64: 64, 1024>}, {pipeline_mode = #tpu.pipeline_mode<synchronous>, transform_indices = @transform_6, window_bounds = array<i64: 128, 8>}, {pipeline_mode = #tpu.pipeline_mode<synchronous>, transform_indices = @transform_7, window_bounds = array<i64: 1, 8>}, {pipeline_mode = #tpu.pipeline_mode<synchronous>, transform_indices = @transform_8, window_bounds = array<i64: 8, 32>}, {pipeline_mode = #tpu.pipeline_mode<synchronous>, transform_indices = @transform_9, window_bounds = array<i64: 1, 32>}, {pipeline_mode = #tpu.pipeline_mode<synchronous>, transform_indices = @transform_10, window_bounds = array<i64: 128, 32>}]} {
    %c0 = arith.constant 0 : index
    %c0_0 = arith.constant 0 : index
    %0 = vector.load %arg1[%c0, %c0_0] : memref<128x32xf32, #tpu.memory_space<vmem>>, vector<128x32xf32>
    %c0_1 = arith.constant 0 : index
    %c0_2 = arith.constant 0 : index
    %1 = vector.load %arg2[%c0_1, %c0_2] : memref<32x8xf32, #tpu.memory_space<vmem>>, vector<32x8xf32>
    %cst = arith.constant dense<0.000000e+00> : vector<128x8xf32>
    %2 = tpu.matmul %0, %1, %cst {dimension_numbers = #tpu.dot_dimension_numbers<[1], [0], [0], [1], [0, 0, 1, 1], [], []>} : vector<128x32xf32>, vector<32x8xf32>, vector<128x8xf32> -> vector<128x8xf32>
    %c0_3 = arith.constant 0 : index
    %c0_4 = arith.constant 0 : index
    %3 = vector.load %arg3[%c0_3, %c0_4] : memref<1x8xf32, #tpu.memory_space<vmem>>, vector<1x8xf32>
    %4 = vector.broadcast %3 : vector<1x8xf32> to vector<128x8xf32>
    %5 = arith.addf %2, %4 : vector<128x8xf32>
    %cst_5 = arith.constant 0.000000e+00 : f32
    %6 = vector.broadcast %cst_5 : f32 to vector<128x8xf32>
    %7 = arith.maximumf %5, %6 : vector<128x8xf32>
    %c0_6 = arith.constant 0 : index
    %c0_7 = arith.constant 0 : index
    %8 = vector.load %arg4[%c0_6, %c0_7] : memref<8x82xf32, #tpu.memory_space<vmem>>, vector<8x82xf32>
    %cst_8 = arith.constant dense<0.000000e+00> : vector<128x82xf32>
    %9 = tpu.matmul %7, %8, %cst_8 {dimension_numbers = #tpu.dot_dimension_numbers<[1], [0], [0], [1], [0, 0, 1, 1], [], []>} : vector<128x8xf32>, vector<8x82xf32>, vector<128x82xf32> -> vector<128x82xf32>
    %c0_9 = arith.constant 0 : index
    %c0_10 = arith.constant 0 : index
    %10 = vector.load %arg5[%c0_9, %c0_10] : memref<1x82xf32, #tpu.memory_space<vmem>>, vector<1x82xf32>
    %11 = vector.broadcast %10 : vector<1x82xf32> to vector<128x82xf32>
    %12 = arith.addf %9, %11 : vector<128x82xf32>
    %13 = vector.extract_strided_slice %12 {offsets = [0, 0], sizes = [128, 64], strides = [1, 1]} : vector<128x82xf32> to vector<128x64xf32>
    %14 = vector.extract_strided_slice %12 {offsets = [0, 80], sizes = [64, 2], strides = [1, 1]} : vector<128x82xf32> to vector<64x2xf32>
    %15 = vector.extract_strided_slice %12 {offsets = [64, 80], sizes = [64, 2], strides = [1, 1]} : vector<128x82xf32> to vector<64x2xf32>
    %16 = tpu.concatenate %14, %15 in 1 : vector<64x2xf32>, vector<64x2xf32> -> vector<64x4xf32>
    %17 = arith.truncf %16 : vector<64x4xf32> to vector<64x4xbf16>
    %c0_11 = arith.constant 0 : index
    %c0_12 = arith.constant 0 : index
    %18 = vector.load %arg6[%c0_11, %c0_12] : memref<64x1024xbf16, #tpu.memory_space<vmem>>, vector<64x1024xbf16>
    %cst_13 = arith.constant dense<0.000000e+00> : vector<4x1024xf32>
    %19 = tpu.matmul %17, %18, %cst_13 {dimension_numbers = #tpu.dot_dimension_numbers<[0], [0], [1], [1], [0, 1, 1, 1], [], []>} : vector<64x4xbf16>, vector<64x1024xbf16>, vector<4x1024xf32> -> vector<4x1024xf32>
    %20 = vector.shape_cast %19 : vector<4x1024xf32> to vector<4x64x16xf32>
    %21 = vector.extract_strided_slice %12 {offsets = [0, 64], sizes = [64, 16], strides = [1, 1]} : vector<128x82xf32> to vector<64x16xf32>
    %22 = vector.extract_strided_slice %12 {offsets = [0, 80], sizes = [64, 2], strides = [1, 1]} : vector<128x82xf32> to vector<64x2xf32>
    %cst_14 = arith.constant dense<0xFF800000> : vector<16xf32>
    %23 = vector.multi_reduction <maximumf>, %21, %cst_14 [0] : vector<64x16xf32> to vector<16xf32>
    %24 = vector.shape_cast %23 : vector<16xf32> to vector<1x16xf32>
    %25 = vector.broadcast %24 : vector<1x16xf32> to vector<64x16xf32>
    %26 = arith.subf %21, %25 : vector<64x16xf32>
    %27 = math.exp %26 : vector<64x16xf32>
    %cst_15 = arith.constant dense<0.000000e+00> : vector<16xf32>
    %28 = vector.multi_reduction <add>, %27, %cst_15 [0] : vector<64x16xf32> to vector<16xf32>
    %29 = vector.shape_cast %28 : vector<16xf32> to vector<1x16xf32>
    %30 = tpu.reciprocal %29 {approx = true} : vector<1x16xf32> -> vector<1x16xf32>
    %cst_16 = arith.constant dense<0.000000e+00> : vector<2x16xf32>
    %31 = tpu.matmul %22, %27, %cst_16 {dimension_numbers = #tpu.dot_dimension_numbers<[0], [0], [1], [1], [0, 1, 1, 1], [], []>} : vector<64x2xf32>, vector<64x16xf32>, vector<2x16xf32> -> vector<2x16xf32>
    %32 = vector.broadcast %30 : vector<1x16xf32> to vector<2x16xf32>
    %33 = arith.mulf %31, %32 : vector<2x16xf32>
    %34 = vector.extract_strided_slice %20 {offsets = [0, 0, 0], sizes = [1, 64, 16], strides = [1, 1, 1]} : vector<4x64x16xf32> to vector<1x64x16xf32>
    %35 = vector.shape_cast %34 : vector<1x64x16xf32> to vector<64x16xf32>
    %36 = vector.extract_strided_slice %33 {offsets = [0, 0], sizes = [1, 16], strides = [1, 1]} : vector<2x16xf32> to vector<1x16xf32>
    %37 = vector.broadcast %36 : vector<1x16xf32> to vector<64x16xf32>
    %38 = arith.addf %35, %37 : vector<64x16xf32>
    %39 = vector.extract_strided_slice %20 {offsets = [1, 0, 0], sizes = [1, 64, 16], strides = [1, 1, 1]} : vector<4x64x16xf32> to vector<1x64x16xf32>
    %40 = vector.shape_cast %39 : vector<1x64x16xf32> to vector<64x16xf32>
    %41 = vector.extract_strided_slice %33 {offsets = [1, 0], sizes = [1, 16], strides = [1, 1]} : vector<2x16xf32> to vector<1x16xf32>
    %42 = vector.broadcast %41 : vector<1x16xf32> to vector<64x16xf32>
    %43 = arith.addf %40, %42 : vector<64x16xf32>
    %44 = tpu.concatenate %38, %43 in 1 : vector<64x16xf32>, vector<64x16xf32> -> vector<64x32xf32>
    %45 = vector.extract_strided_slice %12 {offsets = [64, 64], sizes = [64, 16], strides = [1, 1]} : vector<128x82xf32> to vector<64x16xf32>
    %46 = vector.extract_strided_slice %12 {offsets = [64, 80], sizes = [64, 2], strides = [1, 1]} : vector<128x82xf32> to vector<64x2xf32>
    %cst_17 = arith.constant dense<0xFF800000> : vector<16xf32>
    %47 = vector.multi_reduction <maximumf>, %45, %cst_17 [0] : vector<64x16xf32> to vector<16xf32>
    %48 = vector.shape_cast %47 : vector<16xf32> to vector<1x16xf32>
    %49 = vector.broadcast %48 : vector<1x16xf32> to vector<64x16xf32>
    %50 = arith.subf %45, %49 : vector<64x16xf32>
    %51 = math.exp %50 : vector<64x16xf32>
    %cst_18 = arith.constant dense<0.000000e+00> : vector<16xf32>
    %52 = vector.multi_reduction <add>, %51, %cst_18 [0] : vector<64x16xf32> to vector<16xf32>
    %53 = vector.shape_cast %52 : vector<16xf32> to vector<1x16xf32>
    %54 = tpu.reciprocal %53 {approx = true} : vector<1x16xf32> -> vector<1x16xf32>
    %cst_19 = arith.constant dense<0.000000e+00> : vector<2x16xf32>
    %55 = tpu.matmul %46, %51, %cst_19 {dimension_numbers = #tpu.dot_dimension_numbers<[0], [0], [1], [1], [0, 1, 1, 1], [], []>} : vector<64x2xf32>, vector<64x16xf32>, vector<2x16xf32> -> vector<2x16xf32>
    %56 = vector.broadcast %54 : vector<1x16xf32> to vector<2x16xf32>
    %57 = arith.mulf %55, %56 : vector<2x16xf32>
    %58 = vector.extract_strided_slice %20 {offsets = [2, 0, 0], sizes = [1, 64, 16], strides = [1, 1, 1]} : vector<4x64x16xf32> to vector<1x64x16xf32>
    %59 = vector.shape_cast %58 : vector<1x64x16xf32> to vector<64x16xf32>
    %60 = vector.extract_strided_slice %57 {offsets = [0, 0], sizes = [1, 16], strides = [1, 1]} : vector<2x16xf32> to vector<1x16xf32>
    %61 = vector.broadcast %60 : vector<1x16xf32> to vector<64x16xf32>
    %62 = arith.addf %59, %61 : vector<64x16xf32>
    %63 = vector.extract_strided_slice %20 {offsets = [3, 0, 0], sizes = [1, 64, 16], strides = [1, 1, 1]} : vector<4x64x16xf32> to vector<1x64x16xf32>
    %64 = vector.shape_cast %63 : vector<1x64x16xf32> to vector<64x16xf32>
    %65 = vector.extract_strided_slice %57 {offsets = [1, 0], sizes = [1, 16], strides = [1, 1]} : vector<2x16xf32> to vector<1x16xf32>
    %66 = vector.broadcast %65 : vector<1x16xf32> to vector<64x16xf32>
    %67 = arith.addf %64, %66 : vector<64x16xf32>
    %68 = tpu.concatenate %62, %67 in 1 : vector<64x16xf32>, vector<64x16xf32> -> vector<64x32xf32>
    %69 = tpu.concatenate %44, %68 in 0 : vector<64x32xf32>, vector<64x32xf32> -> vector<128x32xf32>
    %70 = vector.extract_strided_slice %69 {offsets = [0, 0], sizes = [128, 16], strides = [1, 1]} : vector<128x32xf32> to vector<128x16xf32>
    %71 = tpu.concatenate %70, %70, %70, %70 in 1 : vector<128x16xf32>, vector<128x16xf32>, vector<128x16xf32>, vector<128x16xf32> -> vector<128x64xf32>
    %72 = vector.extract_strided_slice %69 {offsets = [0, 16], sizes = [128, 16], strides = [1, 1]} : vector<128x32xf32> to vector<128x16xf32>
    %73 = tpu.concatenate %72, %72, %72, %72 in 1 : vector<128x16xf32>, vector<128x16xf32>, vector<128x16xf32>, vector<128x16xf32> -> vector<128x64xf32>
    %74 = arith.mulf %13, %71 : vector<128x64xf32>
    %75 = arith.mulf %13, %73 : vector<128x64xf32>
    %76 = tpu.concatenate %74, %75 in 1 : vector<128x64xf32>, vector<128x64xf32> -> vector<128x128xf32>
    %c0_20 = arith.constant 0 : index
    %c0_21 = arith.constant 0 : index
    %77 = vector.load %arg7[%c0_20, %c0_21] : memref<128x8xf32, #tpu.memory_space<vmem>>, vector<128x8xf32>
    %cst_22 = arith.constant dense<0.000000e+00> : vector<128x8xf32>
    %78 = tpu.matmul %76, %77, %cst_22 {dimension_numbers = #tpu.dot_dimension_numbers<[1], [0], [0], [1], [0, 0, 1, 1], [], []>} : vector<128x128xf32>, vector<128x8xf32>, vector<128x8xf32> -> vector<128x8xf32>
    %c0_23 = arith.constant 0 : index
    %c0_24 = arith.constant 0 : index
    %79 = vector.load %arg8[%c0_23, %c0_24] : memref<1x8xf32, #tpu.memory_space<vmem>>, vector<1x8xf32>
    %80 = vector.broadcast %79 : vector<1x8xf32> to vector<128x8xf32>
    %81 = arith.addf %78, %80 : vector<128x8xf32>
    %cst_25 = arith.constant 0.000000e+00 : f32
    %82 = vector.broadcast %cst_25 : f32 to vector<128x8xf32>
    %83 = arith.maximumf %81, %82 : vector<128x8xf32>
    %c0_26 = arith.constant 0 : index
    %c0_27 = arith.constant 0 : index
    %84 = vector.load %arg9[%c0_26, %c0_27] : memref<8x32xf32, #tpu.memory_space<vmem>>, vector<8x32xf32>
    %cst_28 = arith.constant dense<0.000000e+00> : vector<128x32xf32>
    %85 = tpu.matmul %83, %84, %cst_28 {dimension_numbers = #tpu.dot_dimension_numbers<[1], [0], [0], [1], [0, 0, 1, 1], [], []>} : vector<128x8xf32>, vector<8x32xf32>, vector<128x32xf32> -> vector<128x32xf32>
    %c0_29 = arith.constant 0 : index
    %c0_30 = arith.constant 0 : index
    %86 = vector.load %arg10[%c0_29, %c0_30] : memref<1x32xf32, #tpu.memory_space<vmem>>, vector<1x32xf32>
    %87 = vector.broadcast %86 : vector<1x32xf32> to vector<128x32xf32>
    %88 = arith.addf %85, %87 : vector<128x32xf32>
    %89 = arith.addf %88, %0 : vector<128x32xf32>
    %cst_31 = arith.constant 0.000000e+00 : f32
    %90 = vector.broadcast %cst_31 : f32 to vector<128x32xf32>
    %91 = arith.maximumf %89, %90 : vector<128x32xf32>
    %c0_32 = arith.constant 0 : index
    %c0_33 = arith.constant 0 : index
    %92 = vector.load %arg11[%c0_32, %c0_33] : memref<128x32xf32, #tpu.memory_space<vmem>>, vector<128x32xf32>
    tpu.vector_store %arg11[%c0_32, %c0_33], %91 {strides = array<i32>} : memref<128x32xf32, #tpu.memory_space<vmem>>, vector<128x32xf32>,
    return
  }
  func.func @transform_0(%arg0: i32) -> (i32, i32) {
    %c0_i32 = arith.constant 0 : i32
    %c0_i32_0 = arith.constant 0 : i32
    %c0_i32_1 = arith.constant 0 : i32
    return %c0_i32, %c0_i32_0 : i32, i32
  }
  func.func @transform_1(%arg0: i32) -> (i32, i32) {
    %c0_i32 = arith.constant 0 : i32
    %c0_i32_0 = arith.constant 0 : i32
    %c0_i32_1 = arith.constant 0 : i32
    return %c0_i32, %c0_i32_0 : i32, i32
  }
  func.func @transform_2(%arg0: i32) -> (i32, i32) {
    %c0_i32 = arith.constant 0 : i32
    %c0_i32_0 = arith.constant 0 : i32
    %c0_i32_1 = arith.constant 0 : i32
    return %c0_i32, %c0_i32_0 : i32, i32
  }
  func.func @transform_3(%arg0: i32) -> (i32, i32) {
    %c0_i32 = arith.constant 0 : i32
    %c0_i32_0 = arith.constant 0 : i32
    %c0_i32_1 = arith.constant 0 : i32
    return %c0_i32, %c0_i32_0 : i32, i32
  }
  func.func @transform_4(%arg0: i32) -> (i32, i32) {
    %c0_i32 = arith.constant 0 : i32
    %c0_i32_0 = arith.constant 0 : i32
    %c0_i32_1 = arith.constant 0 : i32
    return %c0_i32, %c0_i32_0 : i32, i32
  }
  func.func @transform_5(%arg0: i32) -> (i32, i32) {
    %c0_i32 = arith.constant 0 : i32
    %c0_i32_0 = arith.constant 0 : i32
    %c0_i32_1 = arith.constant 0 : i32
    return %c0_i32, %c0_i32_0 : i32, i32
  }
  func.func @transform_6(%arg0: i32) -> (i32, i32) {
    %c0_i32 = arith.constant 0 : i32
    %c0_i32_0 = arith.constant 0 : i32
    %c0_i32_1 = arith.constant 0 : i32
    return %c0_i32, %c0_i32_0 : i32, i32
  }
  func.func @transform_7(%arg0: i32) -> (i32, i32) {
    %c0_i32 = arith.constant 0 : i32
    %c0_i32_0 = arith.constant 0 : i32
    %c0_i32_1 = arith.constant 0 : i32
    return %c0_i32, %c0_i32_0 : i32, i32
  }
  func.func @transform_8(%arg0: i32) -> (i32, i32) {
    %c0_i32 = arith.constant 0 : i32
    %c0_i32_0 = arith.constant 0 : i32
    %c0_i32_1 = arith.constant 0 : i32
    return %c0_i32, %c0_i32_0 : i32, i32
  }
  func.func @transform_9(%arg0: i32) -> (i32, i32) {
    %c0_i32 = arith.constant 0 : i32
    %c0_i32_0 = arith.constant 0 : i32
    %c0_i32_1 = arith.constant 0 : i32
    return %c0_i32, %c0_i32_0 : i32, i32
  }
  func.func @transform_10(%arg0: i32) -> (i32, i32) {
    %c0_i32 = arith.constant 0 : i32
    %c0_i32_0 = arith.constant 0 : i32
    %c0_i32_1 = arith.constant 0 : i32
    return %c0_i32, %c0_i32_0 : i32, i32
  }
}

</mosaic_0001>

<llo_original>
// kernel: tpu_custom_call.1
$region0: #{tpu_custom_call.1}
  #allocation0 [shape = 'u32[]', space=smem, size = 0x4, offset = 0x4, fixed_abs, tag = 'smem constant byte address 0x4 - core index']
  #allocation1 [shape = 'u32[144,128]{1,0:T(1,128)}', space=vmem, size = 0x12000, scoped, tag = 'internal scratch']
  %s0 = inlined_call_operand.vmem [shape: f32[128,32], index: 0, kind: input, shape index: {}]
  %s1 = inlined_call_operand.vmem [shape: f32[32,8], index: 1, kind: input, shape index: {}]
  %s2 = inlined_call_operand.vmem [shape: f32[1,8], index: 2, kind: input, shape index: {}]
  %s3 = inlined_call_operand.vmem [shape: f32[8,82], index: 3, kind: input, shape index: {}]
  %s4 = inlined_call_operand.vmem [shape: f32[1,82], index: 4, kind: input, shape index: {}]
  %s5 = inlined_call_operand.vmem [shape: bf16[64,1024], index: 5, kind: input, shape index: {}]
  %s6 = inlined_call_operand.vmem [shape: f32[128,8], index: 6, kind: input, shape index: {}]
  %s7 = inlined_call_operand.vmem [shape: f32[1,8], index: 7, kind: input, shape index: {}]
  %s8 = inlined_call_operand.vmem [shape: f32[8,32], index: 8, kind: input, shape index: {}]
  %s9 = inlined_call_operand.vmem [shape: f32[1,32], index: 9, kind: input, shape index: {}]
  %s10 = inlined_call_operand.vmem [shape: f32[128,32], index: 10, kind: output, shape index: {}]
  %s11 = sld [smem:[#allocation0]]
  $region50: #{tpu_custom_call.1} parent=0
    _
  %s13 = ssub.s32 1, %s11
  %s14 = scalar_select 0, %s13, %s11
  // Predicated region
  $region2: #{tpu_custom_call.1} parent=0 // pred_check
    _
  $region3: #{tpu_custom_call.1} parent=0 // pred_check_branch
    %16 = sbr.rel (0) target = $region5
  $region4: #{tpu_custom_call.1} parent=0 // pred_region
    _
  $region5: #{tpu_custom_call.1} parent=0 // pred_fallthru
    _
  // Predicated region
  $region6: #{tpu_custom_call.1} parent=0 // pred_check
    _
  $region7: #{tpu_custom_call.1} parent=0 // pred_check_branch
    %18 = sbr.rel (0) target = $region9
  $region8: #{tpu_custom_call.1} parent=0 // pred_region
    _
  $region9: #{tpu_custom_call.1} parent=0 // pred_fallthru
    _
  // Predicated region
  $region10: #{tpu_custom_call.1} parent=0 // pred_check
    _
  $region11: #{tpu_custom_call.1} parent=0 // pred_check_branch
    %20 = sbr.rel (0) target = $region13
  $region12: #{tpu_custom_call.1} parent=0 // pred_region
    _
  $region13: #{tpu_custom_call.1} parent=0 // pred_fallthru
    _
  // Predicated region
  $region14: #{tpu_custom_call.1} parent=0 // pred_check
    _
  $region15: #{tpu_custom_call.1} parent=0 // pred_check_branch
    %22 = sbr.rel (0) target = $region17
  $region16: #{tpu_custom_call.1} parent=0 // pred_region
    _
  $region17: #{tpu_custom_call.1} parent=0 // pred_fallthru
    _
  // Predicated region
  $region18: #{tpu_custom_call.1} parent=0 // pred_check
    _
  $region19: #{tpu_custom_call.1} parent=0 // pred_check_branch
    %24 = sbr.rel (0) target = $region21
  $region20: #{tpu_custom_call.1} parent=0 // pred_region
    _
  $region21: #{tpu_custom_call.1} parent=0 // pred_fallthru
    _
  // Predicated region
  $region22: #{tpu_custom_call.1} parent=0 // pred_check
    _
  $region23: #{tpu_custom_call.1} parent=0 // pred_check_branch
    %26 = sbr.rel (0) target = $region25
  $region24: #{tpu_custom_call.1} parent=0 // pred_region
    _
  $region25: #{tpu_custom_call.1} parent=0 // pred_fallthru
    _
  // Predicated region
  $region26: #{tpu_custom_call.1} parent=0 // pred_check
    _
  $region27: #{tpu_custom_call.1} parent=0 // pred_check_branch
    %28 = sbr.rel (0) target = $region29
  $region28: #{tpu_custom_call.1} parent=0 // pred_region
    _
  $region29: #{tpu_custom_call.1} parent=0 // pred_fallthru
    _
  // Predicated region
  $region30: #{tpu_custom_call.1} parent=0 // pred_check
    _
  $region31: #{tpu_custom_call.1} parent=0 // pred_check_branch
    %30 = sbr.rel (0) target = $region33
  $region32: #{tpu_custom_call.1} parent=0 // pred_region
    _
  $region33: #{tpu_custom_call.1} parent=0 // pred_fallthru
    _
  // Predicated region
  $region34: #{tpu_custom_call.1} parent=0 // pred_check
    _
  $region35: #{tpu_custom_call.1} parent=0 // pred_check_branch
    %32 = sbr.rel (0) target = $region37
  $region36: #{tpu_custom_call.1} parent=0 // pred_region
    _
  $region37: #{tpu_custom_call.1} parent=0 // pred_fallthru
    _
  // Predicated region
  $region38: #{tpu_custom_call.1} parent=0 // pred_check
    _
  $region39: #{tpu_custom_call.1} parent=0 // pred_check_branch
    %34 = sbr.rel (0) target = $region41
  $region40: #{tpu_custom_call.1} parent=0 // pred_region
    _
  $region41: #{tpu_custom_call.1} parent=0 // pred_fallthru
    _
  %v36 = vld [vmem:[%s0] sm:$0xff]
  %v37 = vld [vmem:[%s0 + $0x8] sm:$0xff]
  %v38 = vld [vmem:[%s0 + $0x10] sm:$0xff]
  %v39 = vld [vmem:[%s0 + $0x18] sm:$0xff]
  %v40 = vld [vmem:[%s0 + $0x20] sm:$0xff]
  %v41 = vld [vmem:[%s0 + $0x28] sm:$0xff]
  %v42 = vld [vmem:[%s0 + $0x30] sm:$0xff]
  %v43 = vld [vmem:[%s0 + $0x38] sm:$0xff]
  %v44 = vld [vmem:[%s0 + $0x40] sm:$0xff]
  %v45 = vld [vmem:[%s0 + $0x48] sm:$0xff]
  %v46 = vld [vmem:[%s0 + $0x50] sm:$0xff]
  %v47 = vld [vmem:[%s0 + $0x58] sm:$0xff]
  %v48 = vld [vmem:[%s0 + $0x60] sm:$0xff]
  %v49 = vld [vmem:[%s0 + $0x68] sm:$0xff]
  %v50 = vld [vmem:[%s0 + $0x70] sm:$0xff]
  %v51 = vld [vmem:[%s0 + $0x78] sm:$0xff]
  %v52 = vld [vmem:[%s1] sm:$0xff]
  %v53 = vld [vmem:[%s1 + $0x8] sm:$0xff]
  %v54 = vld [vmem:[%s1 + $0x10] sm:$0xff]
  %v55 = vld [vmem:[%s1 + $0x18] sm:$0xff]
  %v56 = vld [vmem:[%s2] sm:$0x1]
  %v58 = vlaneseq
  %v59 = vshrl.u32 %v58, 7
  %v60 = vsub.s32 0, %v59
  %v61 = vrot.slane %v56, %v60
  %vm63 = vcmask 261120
  %v65 = vsel %vm63, %v36, 0
  %v68 = vsel %vm63, %v37, 0
  %v71 = vsel %vm63, %v38, 0
  %v74 = vsel %vm63, %v39, 0
  %v77 = vsel %vm63, %v40, 0
  %v80 = vsel %vm63, %v41, 0
  %v83 = vsel %vm63, %v42, 0
  %v86 = vsel %vm63, %v43, 0
  %v89 = vsel %vm63, %v44, 0
  %v92 = vsel %vm63, %v45, 0
  %v95 = vsel %vm63, %v46, 0
  %v98 = vsel %vm63, %v47, 0
  %v101 = vsel %vm63, %v48, 0
  %v104 = vsel %vm63, %v49, 0
  %v107 = vsel %vm63, %v50, 0
  %v110 = vsel %vm63, %v51, 0
  %112 = vmatprep.subr.mxu0 0.0
  %113 = vmatpush1.msra.mxu0 %v52
  %114 = vmatprep.subr.mxu0 0.0
  %115 = vmatpush1.msra.mxu0 %v53
  %116 = vmatprep.subr.mxu0 0.0
  %117 = vmatpush1.msra.mxu0 %v54
  %118 = vmatprep.subr.mxu0 0.0
  %119 = vmatpush1.msra.mxu0 %v55
  %120 = vmatprep.subr.mxu0 0.0
  %121 = vmatpush1.msra.mxu0 0.0
  %122 = vmatprep.subr.mxu0 0.0
  %123 = vmatpush1.msra.mxu0 0.0
  %124 = vmatprep.subr.mxu0 0.0
  %125 = vmatpush1.msra.mxu0 0.0
  %126 = vmatprep.subr.mxu0 0.0
  %127 = vmatpush1.msra.mxu0 0.0
  %128 = vmatprep.subr.mxu0 0.0
  %129 = vmatpush1.msra.mxu0 0.0
  %130 = vmatprep.subr.mxu0 0.0
  %131 = vmatpush1.msra.mxu0 0.0
  %132 = vmatprep.subr.mxu0 0.0
  %133 = vmatpush1.msra.mxu0 0.0
  %134 = vmatprep.subr.mxu0 0.0
  %135 = vmatpush1.msra.mxu0 0.0
  %136 = vmatprep.subr.mxu0 0.0
  %137 = vmatpush1.msra.mxu0 0.0
  %138 = vmatprep.subr.mxu0 0.0
  %139 = vmatpush1.msra.mxu0 0.0
  %140 = vmatprep.subr.mxu0 0.0
  %141 = vmatpush1.msra.mxu0 0.0
  %142 = vmatprep.subr.mxu0 0.0
  %143 = vmatpush1.msra.mxu0 0.0
  %144 = vmatprep.subr.mxu0 0.0
  %145 = vmatpush1.msra.mxu0 0.0
  %146 = vmatprep.subr.mxu0 0.0
  %147 = vmatpush1.msra.mxu0 0.0
  %148 = vmatprep.subr.mxu0 0.0
  %149 = vmatpush1.msra.mxu0 0.0
  %150 = vmatprep.subr.mxu0 0.0
  %151 = vmatpush1.msra.mxu0 0.0
  %152 = vmatprep.subr.mxu0 0.0
  %153 = vmatpush1.msra.mxu0 0.0
  %154 = vmatprep.subr.mxu0 0.0
  %155 = vmatpush1.msra.mxu0 0.0
  %156 = vmatprep.subr.mxu0 0.0
  %157 = vmatpush1.msra.mxu0 0.0
  %158 = vmatprep.subr.mxu0 0.0
  %159 = vmatpush1.msra.mxu0 0.0
  %160 = vmatprep.subr.mxu0 0.0
  %161 = vmatpush1.msra.mxu0 0.0
  %162 = vmatprep.subr.mxu0 0.0
  %163 = vmatpush1.msra.mxu0 0.0
  %164 = vmatprep.subr.mxu0 0.0
  %165 = vmatpush1.msra.mxu0 0.0
  %166 = vmatprep.subr.mxu0 0.0
  %167 = vmatpush1.msra.mxu0 0.0
  %168 = vmatprep.subr.mxu0 0.0
  %169 = vmatpush1.msra.mxu0 0.0
  %170 = vmatprep.subr.mxu0 0.0
  %171 = vmatpush1.msra.mxu0 0.0
  %172 = vmatprep.subr.mxu0 0.0
  %173 = vmatpush1.msra.mxu0 0.0
  %174 = vmatprep.subr.mxu0 0.0
  %175 = vmatpush1.msra.mxu0 0.0
  %176 = vmatprep.mubr.f32.mxu0 0.0
  %177 = vmatmul.mubr.f32.gmra.mrb[0].mxu0 %v65
  %v178 = vpop.f32.mrb[0].mxu0
  %v179 = vadd.f32 %v61, %v178
  %v180 = vpop.f32.mrb[0].mxu0
  %181 = vmatprep.mubr.f32.mxu0 0.0
  %182 = vmatmul.mubr.f32.gmra.mrb[0].mxu0 %v68
  %v183 = vpop.f32.mrb[0].mxu0
  %v184 = vadd.f32 %v61, %v183
  %v185 = vpop.f32.mrb[0].mxu0
  %186 = vmatprep.mubr.f32.mxu0 0.0
  %187 = vmatmul.mubr.f32.gmra.mrb[0].mxu0 %v71
  %v188 = vpop.f32.mrb[0].mxu0
  %v189 = vadd.f32 %v61, %v188
  %v190 = vpop.f32.mrb[0].mxu0
  %191 = vmatprep.mubr.f32.mxu0 0.0
  %192 = vmatmul.mubr.f32.gmra.mrb[0].mxu0 %v74
  %v193 = vpop.f32.mrb[0].mxu0
  %v194 = vadd.f32 %v61, %v193
  %v195 = vpop.f32.mrb[0].mxu0
  %196 = vmatprep.mubr.f32.mxu0 0.0
  %197 = vmatmul.mubr.f32.gmra.mrb[0].mxu0 %v77
  %v198 = vpop.f32.mrb[0].mxu0
  %v199 = vadd.f32 %v61, %v198
  %v200 = vpop.f32.mrb[0].mxu0
  %201 = vmatprep.mubr.f32.mxu0 0.0
  %202 = vmatmul.mubr.f32.gmra.mrb[0].mxu0 %v80
  %v203 = vpop.f32.mrb[0].mxu0
  %v204 = vadd.f32 %v61, %v203
  %v205 = vpop.f32.mrb[0].mxu0
  %206 = vmatprep.mubr.f32.mxu0 0.0
  %207 = vmatmul.mubr.f32.gmra.mrb[0].mxu0 %v83
  %v208 = vpop.f32.mrb[0].mxu0
  %v209 = vadd.f32 %v61, %v208
  %v210 = vpop.f32.mrb[0].mxu0
  %211 = vmatprep.mubr.f32.mxu0 0.0
  %212 = vmatmul.mubr.f32.gmra.mrb[0].mxu0 %v86
  %v213 = vpop.f32.mrb[0].mxu0
  %v214 = vadd.f32 %v61, %v213
  %v215 = vpop.f32.mrb[0].mxu0
  %216 = vmatprep.mubr.f32.mxu0 0.0
  %217 = vmatmul.mubr.f32.gmra.mrb[0].mxu0 %v89
  %v218 = vpop.f32.mrb[0].mxu0
  %v219 = vadd.f32 %v61, %v218
  %v220 = vpop.f32.mrb[0].mxu0
  %221 = vmatprep.mubr.f32.mxu0 0.0
  %222 = vmatmul.mubr.f32.gmra.mrb[0].mxu0 %v92
  %v223 = vpop.f32.mrb[0].mxu0
  %v224 = vadd.f32 %v61, %v223
  %v225 = vpop.f32.mrb[0].mxu0
  %226 = vmatprep.mubr.f32.mxu0 0.0
  %227 = vmatmul.mubr.f32.gmra.mrb[0].mxu0 %v95
  %v228 = vpop.f32.mrb[0].mxu0
  %v229 = vadd.f32 %v61, %v228
  %v230 = vpop.f32.mrb[0].mxu0
  %231 = vmatprep.mubr.f32.mxu0 0.0
  %232 = vmatmul.mubr.f32.gmra.mrb[0].mxu0 %v98
  %v233 = vpop.f32.mrb[0].mxu0
  %v234 = vadd.f32 %v61, %v233
  %v235 = vpop.f32.mrb[0].mxu0
  %236 = vmatprep.mubr.f32.mxu0 0.0
  %237 = vmatmul.mubr.f32.gmra.mrb[0].mxu0 %v101
  %v238 = vpop.f32.mrb[0].mxu0
  %v239 = vadd.f32 %v61, %v238
  %v240 = vpop.f32.mrb[0].mxu0
  %241 = vmatprep.mubr.f32.mxu0 0.0
  %242 = vmatmul.mubr.f32.gmra.mrb[0].mxu0 %v104
  %v243 = vpop.f32.mrb[0].mxu0
  %v244 = vadd.f32 %v61, %v243
  %v245 = vpop.f32.mrb[0].mxu0
  %246 = vmatprep.mubr.f32.mxu0 0.0
  %247 = vmatmul.mubr.f32.gmra.mrb[0].mxu0 %v107
  %v248 = vpop.f32.mrb[0].mxu0
  %v249 = vadd.f32 %v61, %v248
  %v250 = vpop.f32.mrb[0].mxu0
  %251 = vmatprep.mubr.f32.mxu0 0.0
  %252 = vmatmul.mubr.f32.gmra.mrb[0].mxu0 %v110
  %v253 = vpop.f32.mrb[0].mxu0
  %v254 = vadd.f32 %v61, %v253
  %v255 = vpop.f32.mrb[0].mxu0
  %256 = vdwg.mxu0
  %v257 = vmax.f32 %v179, 0.0
  %v258 = vmax.f32 %v184, 0.0
  %v259 = vmax.f32 %v189, 0.0
  %v260 = vmax.f32 %v194, 0.0
  %v261 = vmax.f32 %v199, 0.0
  %v262 = vmax.f32 %v204, 0.0
  %v263 = vmax.f32 %v209, 0.0
  %v264 = vmax.f32 %v214, 0.0
  %v265 = vmax.f32 %v219, 0.0
  %v266 = vmax.f32 %v224, 0.0
  %v267 = vmax.f32 %v229, 0.0
  %v268 = vmax.f32 %v234, 0.0
  %v269 = vmax.f32 %v239, 0.0
  %v270 = vmax.f32 %v244, 0.0
  %v271 = vmax.f32 %v249, 0.0
  %v272 = vmax.f32 %v254, 0.0
  %v273 = vld [vmem:[%s3] sm:$0xff]
  %v274 = vld [vmem:[%s4] sm:$0x1]
  %v276 = vlaneseq
  %v277 = vshrl.u32 %v276, 7
  %v278 = vsub.s32 0, %v277
  %v279 = vrot.slane %v274, %v278
  %vm281 = vcmask 64512
  %v283 = vsel %vm281, %v257, 0
  %v286 = vsel %vm281, %v258, 0
  %v289 = vsel %vm281, %v259, 0
  %v292 = vsel %vm281, %v260, 0
  %v295 = vsel %vm281, %v261, 0
  %v298 = vsel %vm281, %v262, 0
  %v301 = vsel %vm281, %v263, 0
  %v304 = vsel %vm281, %v264, 0
  %v307 = vsel %vm281, %v265, 0
  %v310 = vsel %vm281, %v266, 0
  %v313 = vsel %vm281, %v267, 0
  %v316 = vsel %vm281, %v268, 0
  %v319 = vsel %vm281, %v269, 0
  %v322 = vsel %vm281, %v270, 0
  %v325 = vsel %vm281, %v271, 0
  %v328 = vsel %vm281, %v272, 0
  %330 = vmatprep.subr.mxu0 0.0
  %331 = vmatpush1.msra.mxu0 %v273
  %332 = vmatprep.subr.mxu0 0.0
  %333 = vmatpush1.msra.mxu0 0.0
  %334 = vmatprep.subr.mxu0 0.0
  %335 = vmatpush1.msra.mxu0 0.0
  %336 = vmatprep.subr.mxu0 0.0
  %337 = vmatpush1.msra.mxu0 0.0
  %338 = vmatprep.subr.mxu0 0.0
  %339 = vmatpush1.msra.mxu0 0.0
  %340 = vmatprep.subr.mxu0 0.0
  %341 = vmatpush1.msra.mxu0 0.0
  %342 = vmatprep.subr.mxu0 0.0
  %343 = vmatpush1.msra.mxu0 0.0
  %344 = vmatprep.subr.mxu0 0.0
  %345 = vmatpush1.msra.mxu0 0.0
  %346 = vmatprep.subr.mxu0 0.0
  %347 = vmatpush1.msra.mxu0 0.0
  %348 = vmatprep.subr.mxu0 0.0
  %349 = vmatpush1.msra.mxu0 0.0
  %350 = vmatprep.subr.mxu0 0.0
  %351 = vmatpush1.msra.mxu0 0.0
  %352 = vmatprep.subr.mxu0 0.0
  %353 = vmatpush1.msra.mxu0 0.0
  %354 = vmatprep.subr.mxu0 0.0
  %355 = vmatpush1.msra.mxu0 0.0
  %356 = vmatprep.subr.mxu0 0.0
  %357 = vmatpush1.msra.mxu0 0.0
  %358 = vmatprep.subr.mxu0 0.0
  %359 = vmatpush1.msra.mxu0 0.0
  %360 = vmatprep.subr.mxu0 0.0
  %361 = vmatpush1.msra.mxu0 0.0
  %362 = vmatprep.subr.mxu0 0.0
  %363 = vmatpush1.msra.mxu0 0.0
  %364 = vmatprep.subr.mxu0 0.0
  %365 = vmatpush1.msra.mxu0 0.0
  %366 = vmatprep.subr.mxu0 0.0
  %367 = vmatpush1.msra.mxu0 0.0
  %368 = vmatprep.subr.mxu0 0.0
  %369 = vmatpush1.msra.mxu0 0.0
  %370 = vmatprep.subr.mxu0 0.0
  %371 = vmatpush1.msra.mxu0 0.0
  %372 = vmatprep.subr.mxu0 0.0
  %373 = vmatpush1.msra.mxu0 0.0
  %374 = vmatprep.subr.mxu0 0.0
  %375 = vmatpush1.msra.mxu0 0.0
  %376 = vmatprep.subr.mxu0 0.0
  %377 = vmatpush1.msra.mxu0 0.0
  %378 = vmatprep.subr.mxu0 0.0
  %379 = vmatpush1.msra.mxu0 0.0
  %380 = vmatprep.subr.mxu0 0.0
  %381 = vmatpush1.msra.mxu0 0.0
  %382 = vmatprep.subr.mxu0 0.0
  %383 = vmatpush1.msra.mxu0 0.0
  %384 = vmatprep.subr.mxu0 0.0
  %385 = vmatpush1.msra.mxu0 0.0
  %386 = vmatprep.subr.mxu0 0.0
  %387 = vmatpush1.msra.mxu0 0.0
  %388 = vmatprep.subr.mxu0 0.0
  %389 = vmatpush1.msra.mxu0 0.0
  %390 = vmatprep.subr.mxu0 0.0
  %391 = vmatpush1.msra.mxu0 0.0
  %392 = vmatprep.subr.mxu0 0.0
  %393 = vmatpush1.msra.mxu0 0.0
  %394 = vmatprep.mubr.f32.mxu0 0.0
  %395 = vmatmul.mubr.f32.gmra.mrb[0].mxu0 %v283
  %v396 = vpop.f32.mrb[0].mxu0
  %v397 = vadd.f32 %v279, %v396
  %v398 = vpop.f32.mrb[0].mxu0
  %399 = vmatprep.mubr.f32.mxu0 0.0
  %400 = vmatmul.mubr.f32.gmra.mrb[0].mxu0 %v286
  %v401 = vpop.f32.mrb[0].mxu0
  %v402 = vadd.f32 %v279, %v401
  %v403 = vpop.f32.mrb[0].mxu0
  %404 = vmatprep.mubr.f32.mxu0 0.0
  %405 = vmatmul.mubr.f32.gmra.mrb[0].mxu0 %v289
  %v406 = vpop.f32.mrb[0].mxu0
  %v407 = vadd.f32 %v279, %v406
  %v408 = vpop.f32.mrb[0].mxu0
  %409 = vmatprep.mubr.f32.mxu0 0.0
  %410 = vmatmul.mubr.f32.gmra.mrb[0].mxu0 %v292
  %v411 = vpop.f32.mrb[0].mxu0
  %v412 = vadd.f32 %v279, %v411
  %v413 = vpop.f32.mrb[0].mxu0
  %414 = vmatprep.mubr.f32.mxu0 0.0
  %415 = vmatmul.mubr.f32.gmra.mrb[0].mxu0 %v295
  %v416 = vpop.f32.mrb[0].mxu0
  %v417 = vadd.f32 %v279, %v416
  %v418 = vpop.f32.mrb[0].mxu0
  %419 = vmatprep.mubr.f32.mxu0 0.0
  %420 = vmatmul.mubr.f32.gmra.mrb[0].mxu0 %v298
  %v421 = vpop.f32.mrb[0].mxu0
  %v422 = vadd.f32 %v279, %v421
  %v423 = vpop.f32.mrb[0].mxu0
  %424 = vmatprep.mubr.f32.mxu0 0.0
  %425 = vmatmul.mubr.f32.gmra.mrb[0].mxu0 %v301
  %v426 = vpop.f32.mrb[0].mxu0
  %v427 = vadd.f32 %v279, %v426
  %v428 = vpop.f32.mrb[0].mxu0
  %429 = vmatprep.mubr.f32.mxu0 0.0
  %430 = vmatmul.mubr.f32.gmra.mrb[0].mxu0 %v304
  %v431 = vpop.f32.mrb[0].mxu0
  %v432 = vadd.f32 %v279, %v431
  %v433 = vpop.f32.mrb[0].mxu0
  %434 = vmatprep.mubr.f32.mxu0 0.0
  %435 = vmatmul.mubr.f32.gmra.mrb[0].mxu0 %v307
  %v436 = vpop.f32.mrb[0].mxu0
  %v437 = vadd.f32 %v279, %v436
  %v438 = vpop.f32.mrb[0].mxu0
  %439 = vmatprep.mubr.f32.mxu0 0.0
  %440 = vmatmul.mubr.f32.gmra.mrb[0].mxu0 %v310
  %v441 = vpop.f32.mrb[0].mxu0
  %v442 = vadd.f32 %v279, %v441
  %v443 = vpop.f32.mrb[0].mxu0
  %444 = vmatprep.mubr.f32.mxu0 0.0
  %445 = vmatmul.mubr.f32.gmra.mrb[0].mxu0 %v313
  %v446 = vpop.f32.mrb[0].mxu0
  %v447 = vadd.f32 %v279, %v446
  %v448 = vpop.f32.mrb[0].mxu0
  %449 = vmatprep.mubr.f32.mxu0 0.0
  %450 = vmatmul.mubr.f32.gmra.mrb[0].mxu0 %v316
  %v451 = vpop.f32.mrb[0].mxu0
  %v452 = vadd.f32 %v279, %v451
  %v453 = vpop.f32.mrb[0].mxu0
  %454 = vmatprep.mubr.f32.mxu0 0.0
  %455 = vmatmul.mubr.f32.gmra.mrb[0].mxu0 %v319
  %v456 = vpop.f32.mrb[0].mxu0
  %v457 = vadd.f32 %v279, %v456
  %v458 = vpop.f32.mrb[0].mxu0
  %459 = vmatprep.mubr.f32.mxu0 0.0
  %460 = vmatmul.mubr.f32.gmra.mrb[0].mxu0 %v322
  %v461 = vpop.f32.mrb[0].mxu0
  %v462 = vadd.f32 %v279, %v461
  %v463 = vpop.f32.mrb[0].mxu0
  %464 = vmatprep.mubr.f32.mxu0 0.0
  %465 = vmatmul.mubr.f32.gmra.mrb[0].mxu0 %v325
  %v466 = vpop.f32.mrb[0].mxu0
  %v467 = vadd.f32 %v279, %v466
  %v468 = vpop.f32.mrb[0].mxu0
  %469 = vmatprep.mubr.f32.mxu0 0.0
  %470 = vmatmul.mubr.f32.gmra.mrb[0].mxu0 %v328
  %v471 = vpop.f32.mrb[0].mxu0
  %v472 = vadd.f32 %v279, %v471
  %v473 = vpop.f32.mrb[0].mxu0
  %474 = vdwg.mxu0
  %483 = vrot.lane.b32.xlu0 %v397, 48
  %v484 = vpop.permute.xlu0 %483
  %485 = vrot.lane.b32.xlu0 %v402, 48
  %v486 = vpop.permute.xlu0 %485
  %487 = vrot.lane.b32.xlu0 %v407, 48
  %v488 = vpop.permute.xlu0 %487
  %489 = vrot.lane.b32.xlu0 %v412, 48
  %v490 = vpop.permute.xlu0 %489
  %491 = vrot.lane.b32.xlu0 %v417, 48
  %v492 = vpop.permute.xlu0 %491
  %493 = vrot.lane.b32.xlu0 %v422, 48
  %v494 = vpop.permute.xlu0 %493
  %495 = vrot.lane.b32.xlu0 %v427, 48
  %v496 = vpop.permute.xlu0 %495
  %497 = vrot.lane.b32.xlu0 %v432, 48
  %v498 = vpop.permute.xlu0 %497
  %515 = vrot.lane.b32.xlu0 %v437, 50
  %v516 = vpop.permute.xlu0 %515
  %517 = vrot.lane.b32.xlu0 %v442, 50
  %v518 = vpop.permute.xlu0 %517
  %519 = vrot.lane.b32.xlu0 %v447, 50
  %v520 = vpop.permute.xlu0 %519
  %521 = vrot.lane.b32.xlu0 %v452, 50
  %v522 = vpop.permute.xlu0 %521
  %523 = vrot.lane.b32.xlu0 %v457, 50
  %v524 = vpop.permute.xlu0 %523
  %525 = vrot.lane.b32.xlu0 %v462, 50
  %v526 = vpop.permute.xlu0 %525
  %527 = vrot.lane.b32.xlu0 %v467, 50
  %v528 = vpop.permute.xlu0 %527
  %529 = vrot.lane.b32.xlu0 %v472, 50
  %v530 = vpop.permute.xlu0 %529
  %vm539 = vcmask 15360
  %v540 = vsel %vm539, %v484, %v516
  %v541 = vsel %vm539, %v486, %v518
  %v542 = vsel %vm539, %v488, %v520
  %v543 = vsel %vm539, %v490, %v522
  %v544 = vsel %vm539, %v492, %v524
  %v545 = vsel %vm539, %v494, %v526
  %v546 = vsel %vm539, %v496, %v528
  %v547 = vsel %vm539, %v498, %v530
  %v548 = vpack.c.bf16 %v541, %v540
  %v549 = vpack.c.bf16 %v543, %v542
  %v550 = vpack.c.bf16 %v545, %v544
  %v551 = vpack.c.bf16 %v547, %v546
  %v552 = vld [vmem:[%s5] sm:$0xff]
  %v553 = vld [vmem:[%s5 + $0x8] sm:$0xff]
  %v554 = vld [vmem:[%s5 + $0x10] sm:$0xff]
  %v555 = vld [vmem:[%s5 + $0x18] sm:$0xff]
  %v556 = vld [vmem:[%s5 + $0x20] sm:$0xff]
  %v557 = vld [vmem:[%s5 + $0x28] sm:$0xff]
  %v558 = vld [vmem:[%s5 + $0x30] sm:$0xff]
  %v559 = vld [vmem:[%s5 + $0x38] sm:$0xff]
  %v560 = vld [vmem:[%s5 + $0x40] sm:$0xff]
  %v561 = vld [vmem:[%s5 + $0x48] sm:$0xff]
  %v562 = vld [vmem:[%s5 + $0x50] sm:$0xff]
  %v563 = vld [vmem:[%s5 + $0x58] sm:$0xff]
  %v564 = vld [vmem:[%s5 + $0x60] sm:$0xff]
  %v565 = vld [vmem:[%s5 + $0x68] sm:$0xff]
  %v566 = vld [vmem:[%s5 + $0x70] sm:$0xff]
  %v567 = vld [vmem:[%s5 + $0x78] sm:$0xff]
  %v568 = vld [vmem:[%s5 + $0x80] sm:$0xff]
  %v569 = vld [vmem:[%s5 + $0x88] sm:$0xff]
  %v570 = vld [vmem:[%s5 + $0x90] sm:$0xff]
  %v571 = vld [vmem:[%s5 + $0x98] sm:$0xff]
  %v572 = vld [vmem:[%s5 + $0xa0] sm:$0xff]
  %v573 = vld [vmem:[%s5 + $0xa8] sm:$0xff]
  %v574 = vld [vmem:[%s5 + $0xb0] sm:$0xff]
  %v575 = vld [vmem:[%s5 + $0xb8] sm:$0xff]
  %v576 = vld [vmem:[%s5 + $0xc0] sm:$0xff]
  %v577 = vld [vmem:[%s5 + $0xc8] sm:$0xff]
  %v578 = vld [vmem:[%s5 + $0xd0] sm:$0xff]
  %v579 = vld [vmem:[%s5 + $0xd8] sm:$0xff]
  %v580 = vld [vmem:[%s5 + $0xe0] sm:$0xff]
  %v581 = vld [vmem:[%s5 + $0xe8] sm:$0xff]
  %v582 = vld [vmem:[%s5 + $0xf0] sm:$0xff]
  %v583 = vld [vmem:[%s5 + $0xf8] sm:$0xff]
  %584 = vxpose.xlu0.c.b16.start [1/8] %v548, 128
  %585 = vxpose.xlu0.c.b16.cont [2/8] %v549, 128
  %586 = vxpose.xlu0.c.b16.cont [3/8] %v550, 128
  %587 = vxpose.xlu0.c.b16.cont [4/8] %v551, 128
  %588 = vxpose.xlu0.c.b16.cont [5/8] 0, 128
  %589 = vxpose.xlu0.c.b16.cont [6/8] 0, 128
  %590 = vxpose.xlu0.c.b16.cont [7/8] 0, 128
  %591 = vxpose.xlu0.c.b16.end [8/8] 0, 128
  %v592 = vpop.trf.xlu0
  %v593 = vpop.trf.xlu0
  %v594 = vpop.trf.xlu0
  %v595 = vpop.trf.xlu0
  %v596 = vpop.trf.xlu0
  %v597 = vpop.trf.xlu0
  %v598 = vpop.trf.xlu0
  %v599 = vpop.trf.xlu0
  %v632 = vunpack.c.l.b16 %v552
  %v633 = vunpack.c.h.b16 %v552
  %v634 = vunpack.c.l.b16 %v553
  %v635 = vunpack.c.h.b16 %v553
  %v636 = vunpack.c.l.b16 %v554
  %v637 = vunpack.c.h.b16 %v554
  %v638 = vunpack.c.l.b16 %v555
  %v639 = vunpack.c.h.b16 %v555
  %v640 = vunpack.c.l.b16 %v556
  %v641 = vunpack.c.h.b16 %v556
  %v642 = vunpack.c.l.b16 %v557
  %v643 = vunpack.c.h.b16 %v557
  %v644 = vunpack.c.l.b16 %v558
  %v645 = vunpack.c.h.b16 %v558
  %v646 = vunpack.c.l.b16 %v559
  %v647 = vunpack.c.h.b16 %v559
  %v648 = vunpack.c.l.b16 %v560
  %v649 = vunpack.c.h.b16 %v560
  %v650 = vunpack.c.l.b16 %v561
  %v651 = vunpack.c.h.b16 %v561
  %v652 = vunpack.c.l.b16 %v562
  %v653 = vunpack.c.h.b16 %v562
  %v654 = vunpack.c.l.b16 %v563
  %v655 = vunpack.c.h.b16 %v563
  %v656 = vunpack.c.l.b16 %v564
  %v657 = vunpack.c.h.b16 %v564
  %v658 = vunpack.c.l.b16 %v565
  %v659 = vunpack.c.h.b16 %v565
  %v660 = vunpack.c.l.b16 %v566
  %v661 = vunpack.c.h.b16 %v566
  %v662 = vunpack.c.l.b16 %v567
  %v663 = vunpack.c.h.b16 %v567
  %v664 = vunpack.c.l.b16 %v568
  %v665 = vunpack.c.h.b16 %v568
  %v666 = vunpack.c.l.b16 %v569
  %v667 = vunpack.c.h.b16 %v569
  %v668 = vunpack.c.l.b16 %v570
  %v669 = vunpack.c.h.b16 %v570
  %v670 = vunpack.c.l.b16 %v571
  %v671 = vunpack.c.h.b16 %v571
  %v672 = vunpack.c.l.b16 %v572
  %v673 = vunpack.c.h.b16 %v572
  %v674 = vunpack.c.l.b16 %v573
  %v675 = vunpack.c.h.b16 %v573
  %v676 = vunpack.c.l.b16 %v574
  %v677 = vunpack.c.h.b16 %v574
  %v678 = vunpack.c.l.b16 %v575
  %v679 = vunpack.c.h.b16 %v575
  %v680 = vunpack.c.l.b16 %v576
  %v681 = vunpack.c.h.b16 %v576
  %v682 = vunpack.c.l.b16 %v577
  %v683 = vunpack.c.h.b16 %v577
  %v684 = vunpack.c.l.b16 %v578
  %v685 = vunpack.c.h.b16 %v578
  %v686 = vunpack.c.l.b16 %v579
  %v687 = vunpack.c.h.b16 %v579
  %v688 = vunpack.c.l.b16 %v580
  %v689 = vunpack.c.h.b16 %v580
  %v690 = vunpack.c.l.b16 %v581
  %v691 = vunpack.c.h.b16 %v581
  %v692 = vunpack.c.l.b16 %v582
  %v693 = vunpack.c.h.b16 %v582
  %v694 = vunpack.c.l.b16 %v583
  %v695 = vunpack.c.h.b16 %v583
  %v696 = vpack.c.b16 %v640, %v632
  %v697 = vpack.c.b16 %v641, %v633
  %v698 = vpack.c.b16 %v642, %v634
  %v699 = vpack.c.b16 %v643, %v635
  %v700 = vpack.c.b16 %v644, %v636
  %v701 = vpack.c.b16 %v645, %v637
  %v702 = vpack.c.b16 %v646, %v638
  %v703 = vpack.c.b16 %v647, %v639
  %v704 = vpack.c.b16 %v656, %v648
  %v705 = vpack.c.b16 %v657, %v649
  %v706 = vpack.c.b16 %v658, %v650
  %v707 = vpack.c.b16 %v659, %v651
  %v708 = vpack.c.b16 %v660, %v652
  %v709 = vpack.c.b16 %v661, %v653
  %v710 = vpack.c.b16 %v662, %v654
  %v711 = vpack.c.b16 %v663, %v655
  %v712 = vpack.c.b16 %v672, %v664
  %v713 = vpack.c.b16 %v673, %v665
  %v714 = vpack.c.b16 %v674, %v666
  %v715 = vpack.c.b16 %v675, %v667
  %v716 = vpack.c.b16 %v676, %v668
  %v717 = vpack.c.b16 %v677, %v669
  %v718 = vpack.c.b16 %v678, %v670
  %v719 = vpack.c.b16 %v679, %v671
  %v720 = vpack.c.b16 %v688, %v680
  %v721 = vpack.c.b16 %v689, %v681
  %v722 = vpack.c.b16 %v690, %v682
  %v723 = vpack.c.b16 %v691, %v683
  %v724 = vpack.c.b16 %v692, %v684
  %v725 = vpack.c.b16 %v693, %v685
  %v726 = vpack.c.b16 %v694, %v686
  %v727 = vpack.c.b16 %v695, %v687
  %vm760 = vcmask 523264
  %v762 = vsel %vm760, %v592, 0
  %764 = vmatprep.subr.bf16.mxu0 %v697
  %765 = vmatpush1.bf16.msra.mxu0 %v696
  %766 = vmatprep.subr.bf16.mxu0 %v705
  %767 = vmatpush1.bf16.msra.mxu0 %v704
  %768 = vmatprep.subr.bf16.mxu0 %v713
  %769 = vmatpush1.bf16.msra.mxu0 %v712
  %770 = vmatprep.subr.bf16.mxu0 %v721
  %771 = vmatpush1.bf16.msra.mxu0 %v720
  %772 = vmatprep.subr.bf16.mxu0 0
  %773 = vmatpush1.bf16.msra.mxu0 0
  %774 = vmatprep.subr.bf16.mxu0 0
  %775 = vmatpush1.bf16.msra.mxu0 0
  %776 = vmatprep.subr.bf16.mxu0 0
  %777 = vmatpush1.bf16.msra.mxu0 0
  %778 = vmatprep.subr.bf16.mxu0 0
  %779 = vmatpush1.bf16.msra.mxu0 0
  %780 = vmatprep.subr.bf16.mxu0 0
  %781 = vmatpush1.bf16.msra.mxu0 0
  %782 = vmatprep.subr.bf16.mxu0 0
  %783 = vmatpush1.bf16.msra.mxu0 0
  %784 = vmatprep.subr.bf16.mxu0 0
  %785 = vmatpush1.bf16.msra.mxu0 0
  %786 = vmatprep.subr.bf16.mxu0 0
  %787 = vmatpush1.bf16.msra.mxu0 0
  %788 = vmatprep.subr.bf16.mxu0 0
  %789 = vmatpush1.bf16.msra.mxu0 0
  %790 = vmatprep.subr.bf16.mxu0 0
  %791 = vmatpush1.bf16.msra.mxu0 0
  %792 = vmatprep.subr.bf16.mxu0 0
  %793 = vmatpush1.bf16.msra.mxu0 0
  %794 = vmatprep.subr.bf16.mxu0 0
  %795 = vmatpush1.bf16.msra.mxu0 0
  %796 = vmatprep.mubr.bf16.mxu0 0
  %797 = vmatmul.mubr.bf16.gmra.mrb[0].mxu0 %v762
  %v798 = vpop.f32.mrb[0].mxu0
  %v799 = vadd.f32 0.0, %v798
  %v800 = vpop.f32.mrb[0].mxu0
  %v801 = vadd.f32 0.0, %v800
  %v802 = vpop.f32.mrb[0].mxu0
  %v803 = vpop.f32.mrb[0].mxu0
  %804 = vdwg.mxu0
  %805 = vmatprep.subr.bf16.mxu0 %v699
  %806 = vmatpush1.bf16.msra.mxu0 %v698
  %807 = vmatprep.subr.bf16.mxu0 %v707
  %808 = vmatpush1.bf16.msra.mxu0 %v706
  %809 = vmatprep.subr.bf16.mxu0 %v715
  %810 = vmatpush1.bf16.msra.mxu0 %v714
  %811 = vmatprep.subr.bf16.mxu0 %v723
  %812 = vmatpush1.bf16.msra.mxu0 %v722
  %813 = vmatprep.subr.bf16.mxu0 0
  %814 = vmatpush1.bf16.msra.mxu0 0
  %815 = vmatprep.subr.bf16.mxu0 0
  %816 = vmatpush1.bf16.msra.mxu0 0
  %817 = vmatprep.subr.bf16.mxu0 0
  %818 = vmatpush1.bf16.msra.mxu0 0
  %819 = vmatprep.subr.bf16.mxu0 0
  %820 = vmatpush1.bf16.msra.mxu0 0
  %821 = vmatprep.subr.bf16.mxu0 0
  %822 = vmatpush1.bf16.msra.mxu0 0
  %823 = vmatprep.subr.bf16.mxu0 0
  %824 = vmatpush1.bf16.msra.mxu0 0
  %825 = vmatprep.subr.bf16.mxu0 0
  %826 = vmatpush1.bf16.msra.mxu0 0
  %827 = vmatprep.subr.bf16.mxu0 0
  %828 = vmatpush1.bf16.msra.mxu0 0
  %829 = vmatprep.subr.bf16.mxu0 0
  %830 = vmatpush1.bf16.msra.mxu0 0
  %831 = vmatprep.subr.bf16.mxu0 0
  %832 = vmatpush1.bf16.msra.mxu0 0
  %833 = vmatprep.subr.bf16.mxu0 0
  %834 = vmatpush1.bf16.msra.mxu0 0
  %835 = vmatprep.subr.bf16.mxu0 0
  %836 = vmatpush1.bf16.msra.mxu0 0
  %837 = vmatprep.mubr.bf16.mxu0 0
  %838 = vmatmul.mubr.bf16.gmra.mrb[0].mxu0 %v762
  %v839 = vpop.f32.mrb[0].mxu0
  %v840 = vadd.f32 0.0, %v839
  %v841 = vpop.f32.mrb[0].mxu0
  %v842 = vadd.f32 0.0, %v841
  %v843 = vpop.f32.mrb[0].mxu0
  %v844 = vpop.f32.mrb[0].mxu0
  %845 = vdwg.mxu0
  %846 = vmatprep.subr.bf16.mxu0 %v701
  %847 = vmatpush1.bf16.msra.mxu0 %v700
  %848 = vmatprep.subr.bf16.mxu0 %v709
  %849 = vmatpush1.bf16.msra.mxu0 %v708
  %850 = vmatprep.subr.bf16.mxu0 %v717
  %851 = vmatpush1.bf16.msra.mxu0 %v716
  %852 = vmatprep.subr.bf16.mxu0 %v725
  %853 = vmatpush1.bf16.msra.mxu0 %v724
  %854 = vmatprep.subr.bf16.mxu0 0
  %855 = vmatpush1.bf16.msra.mxu0 0
  %856 = vmatprep.subr.bf16.mxu0 0
  %857 = vmatpush1.bf16.msra.mxu0 0
  %858 = vmatprep.subr.bf16.mxu0 0
  %859 = vmatpush1.bf16.msra.mxu0 0
  %860 = vmatprep.subr.bf16.mxu0 0
  %861 = vmatpush1.bf16.msra.mxu0 0
  %862 = vmatprep.subr.bf16.mxu0 0
  %863 = vmatpush1.bf16.msra.mxu0 0
  %864 = vmatprep.subr.bf16.mxu0 0
  %865 = vmatpush1.bf16.msra.mxu0 0
  %866 = vmatprep.subr.bf16.mxu0 0
  %867 = vmatpush1.bf16.msra.mxu0 0
  %868 = vmatprep.subr.bf16.mxu0 0
  %869 = vmatpush1.bf16.msra.mxu0 0
  %870 = vmatprep.subr.bf16.mxu0 0
  %871 = vmatpush1.bf16.msra.mxu0 0
  %872 = vmatprep.subr.bf16.mxu0 0
  %873 = vmatpush1.bf16.msra.mxu0 0
  %874 = vmatprep.subr.bf16.mxu0 0
  %875 = vmatpush1.bf16.msra.mxu0 0
  %876 = vmatprep.subr.bf16.mxu0 0
  %877 = vmatpush1.bf16.msra.mxu0 0
  %878 = vmatprep.mubr.bf16.mxu0 0
  %879 = vmatmul.mubr.bf16.gmra.mrb[0].mxu0 %v762
  %v880 = vpop.f32.mrb[0].mxu0
  %v881 = vadd.f32 0.0, %v880
  %v882 = vpop.f32.mrb[0].mxu0
  %v883 = vadd.f32 0.0, %v882
  %v884 = vpop.f32.mrb[0].mxu0
  %v885 = vpop.f32.mrb[0].mxu0
  %886 = vdwg.mxu0
  %887 = vmatprep.subr.bf16.mxu0 %v703
  %888 = vmatpush1.bf16.msra.mxu0 %v702
  %889 = vmatprep.subr.bf16.mxu0 %v711
  %890 = vmatpush1.bf16.msra.mxu0 %v710
  %891 = vmatprep.subr.bf16.mxu0 %v719
  %892 = vmatpush1.bf16.msra.mxu0 %v718
  %893 = vmatprep.subr.bf16.mxu0 %v727
  %894 = vmatpush1.bf16.msra.mxu0 %v726
  %895 = vmatprep.subr.bf16.mxu0 0
  %896 = vmatpush1.bf16.msra.mxu0 0
  %897 = vmatprep.subr.bf16.mxu0 0
  %898 = vmatpush1.bf16.msra.mxu0 0
  %899 = vmatprep.subr.bf16.mxu0 0
  %900 = vmatpush1.bf16.msra.mxu0 0
  %901 = vmatprep.subr.bf16.mxu0 0
  %902 = vmatpush1.bf16.msra.mxu0 0
  %903 = vmatprep.subr.bf16.mxu0 0
  %904 = vmatpush1.bf16.msra.mxu0 0
  %905 = vmatprep.subr.bf16.mxu0 0
  %906 = vmatpush1.bf16.msra.mxu0 0
  %907 = vmatprep.subr.bf16.mxu0 0
  %908 = vmatpush1.bf16.msra.mxu0 0
  %909 = vmatprep.subr.bf16.mxu0 0
  %910 = vmatpush1.bf16.msra.mxu0 0
  %911 = vmatprep.subr.bf16.mxu0 0
  %912 = vmatpush1.bf16.msra.mxu0 0
  %913 = vmatprep.subr.bf16.mxu0 0
  %914 = vmatpush1.bf16.msra.mxu0 0
  %915 = vmatprep.subr.bf16.mxu0 0
  %916 = vmatpush1.bf16.msra.mxu0 0
  %917 = vmatprep.subr.bf16.mxu0 0
  %918 = vmatpush1.bf16.msra.mxu0 0
  %919 = vmatprep.mubr.bf16.mxu0 0
  %920 = vmatmul.mubr.bf16.gmra.mrb[0].mxu0 %v762
  %v921 = vpop.f32.mrb[0].mxu0
  %v922 = vadd.f32 0.0, %v921
  %v923 = vpop.f32.mrb[0].mxu0
  %v924 = vadd.f32 0.0, %v923
  %v925 = vpop.f32.mrb[0].mxu0
  %v926 = vpop.f32.mrb[0].mxu0
  %927 = vdwg.mxu0
  %929 = vrot.lane.b32.xlu0 %v799, 112
  %v930 = vpop.permute.xlu0 %929
  %932 = vrot.lane.b32.xlu0 %v799, 96
  %v933 = vpop.permute.xlu0 %932
  %935 = vrot.lane.b32.xlu0 %v799, 80
  %v936 = vpop.permute.xlu0 %935
  %938 = vrot.lane.b32.xlu0 %v799, 64
  %v939 = vpop.permute.xlu0 %938
  %941 = vrot.lane.b32.xlu0 %v799, 48
  %v942 = vpop.permute.xlu0 %941
  %944 = vrot.lane.b32.xlu0 %v799, 32
  %v945 = vpop.permute.xlu0 %944
  %947 = vrot.lane.b32.xlu0 %v799, 16
  %v948 = vpop.permute.xlu0 %947
  %951 = vrot.lane.b32.xlu0 %v801, 112
  %v952 = vpop.permute.xlu0 %951
  %954 = vrot.lane.b32.xlu0 %v801, 96
  %v955 = vpop.permute.xlu0 %954
  %957 = vrot.lane.b32.xlu0 %v801, 80
  %v958 = vpop.permute.xlu0 %957
  %960 = vrot.lane.b32.xlu0 %v801, 64
  %v961 = vpop.permute.xlu0 %960
  %963 = vrot.lane.b32.xlu0 %v801, 48
  %v964 = vpop.permute.xlu0 %963
  %966 = vrot.lane.b32.xlu0 %v801, 32
  %v967 = vpop.permute.xlu0 %966
  %969 = vrot.lane.b32.xlu0 %v801, 16
  %v970 = vpop.permute.xlu0 %969
  %973 = vrot.lane.b32.xlu0 %v840, 112
  %v974 = vpop.permute.xlu0 %973
  %976 = vrot.lane.b32.xlu0 %v840, 96
  %v977 = vpop.permute.xlu0 %976
  %979 = vrot.lane.b32.xlu0 %v840, 80
  %v980 = vpop.permute.xlu0 %979
  %982 = vrot.lane.b32.xlu0 %v840, 64
  %v983 = vpop.permute.xlu0 %982
  %985 = vrot.lane.b32.xlu0 %v840, 48
  %v986 = vpop.permute.xlu0 %985
  %988 = vrot.lane.b32.xlu0 %v840, 32
  %v989 = vpop.permute.xlu0 %988
  %991 = vrot.lane.b32.xlu0 %v840, 16
  %v992 = vpop.permute.xlu0 %991
  %995 = vrot.lane.b32.xlu0 %v842, 112
  %v996 = vpop.permute.xlu0 %995
  %998 = vrot.lane.b32.xlu0 %v842, 96
  %v999 = vpop.permute.xlu0 %998
  %1001 = vrot.lane.b32.xlu0 %v842, 80
  %v1002 = vpop.permute.xlu0 %1001
  %1004 = vrot.lane.b32.xlu0 %v842, 64
  %v1005 = vpop.permute.xlu0 %1004
  %1007 = vrot.lane.b32.xlu0 %v842, 48
  %v1008 = vpop.permute.xlu0 %1007
  %1010 = vrot.lane.b32.xlu0 %v842, 32
  %v1011 = vpop.permute.xlu0 %1010
  %1013 = vrot.lane.b32.xlu0 %v842, 16
  %v1014 = vpop.permute.xlu0 %1013
  %1017 = vrot.lane.b32.xlu0 %v881, 112
  %v1018 = vpop.permute.xlu0 %1017
  %1020 = vrot.lane.b32.xlu0 %v881, 96
  %v1021 = vpop.permute.xlu0 %1020
  %1023 = vrot.lane.b32.xlu0 %v881, 80
  %v1024 = vpop.permute.xlu0 %1023
  %1026 = vrot.lane.b32.xlu0 %v881, 64
  %v1027 = vpop.permute.xlu0 %1026
  %1029 = vrot.lane.b32.xlu0 %v881, 48
  %v1030 = vpop.permute.xlu0 %1029
  %1032 = vrot.lane.b32.xlu0 %v881, 32
  %v1033 = vpop.permute.xlu0 %1032
  %1035 = vrot.lane.b32.xlu0 %v881, 16
  %v1036 = vpop.permute.xlu0 %1035
  %1039 = vrot.lane.b32.xlu0 %v883, 112
  %v1040 = vpop.permute.xlu0 %1039
  %1042 = vrot.lane.b32.xlu0 %v883, 96
  %v1043 = vpop.permute.xlu0 %1042
  %1045 = vrot.lane.b32.xlu0 %v883, 80
  %v1046 = vpop.permute.xlu0 %1045
  %1048 = vrot.lane.b32.xlu0 %v883, 64
  %v1049 = vpop.permute.xlu0 %1048
  %1051 = vrot.lane.b32.xlu0 %v883, 48
  %v1052 = vpop.permute.xlu0 %1051
  %1054 = vrot.lane.b32.xlu0 %v883, 32
  %v1055 = vpop.permute.xlu0 %1054
  %1057 = vrot.lane.b32.xlu0 %v883, 16
  %v1058 = vpop.permute.xlu0 %1057
  %1061 = vrot.lane.b32.xlu0 %v922, 112
  %v1062 = vpop.permute.xlu0 %1061
  %1064 = vrot.lane.b32.xlu0 %v922, 96
  %v1065 = vpop.permute.xlu0 %1064
  %1067 = vrot.lane.b32.xlu0 %v922, 80
  %v1068 = vpop.permute.xlu0 %1067
  %1070 = vrot.lane.b32.xlu0 %v922, 64
  %v1071 = vpop.permute.xlu0 %1070
  %1073 = vrot.lane.b32.xlu0 %v922, 48
  %v1074 = vpop.permute.xlu0 %1073
  %1076 = vrot.lane.b32.xlu0 %v922, 32
  %v1077 = vpop.permute.xlu0 %1076
  %1079 = vrot.lane.b32.xlu0 %v922, 16
  %v1080 = vpop.permute.xlu0 %1079
  %1083 = vrot.lane.b32.xlu0 %v924, 112
  %v1084 = vpop.permute.xlu0 %1083
  %1086 = vrot.lane.b32.xlu0 %v924, 96
  %v1087 = vpop.permute.xlu0 %1086
  %1089 = vrot.lane.b32.xlu0 %v924, 80
  %v1090 = vpop.permute.xlu0 %1089
  %1092 = vrot.lane.b32.xlu0 %v924, 64
  %v1093 = vpop.permute.xlu0 %1092
  %1095 = vrot.lane.b32.xlu0 %v924, 48
  %v1096 = vpop.permute.xlu0 %1095
  %1098 = vrot.lane.b32.xlu0 %v924, 32
  %v1099 = vpop.permute.xlu0 %1098
  %1101 = vrot.lane.b32.xlu0 %v924, 16
  %v1102 = vpop.permute.xlu0 %1101
  %v1104 = vcombine.low %v799, %v933
  %v1106 = vunpack.c.l.s4 1983009808
  %v1107 = vunpack.c.0.s8 %v1106
  %v1108 = vlaneseq
  %v1109 = vshrl.u32 %v1108, 7
  %v1110 = vsub.s32 %v1107, %v1109
  %v1111 = vrot.slane %v1104, %v1110
  %v1112 = vcombine.low %v930, %v936
  %v1114 = vunpack.c.l.s4 1983009808
  %v1115 = vunpack.c.0.s8 %v1114
  %v1116 = vlaneseq
  %v1117 = vshrl.u32 %v1116, 7
  %v1118 = vsub.s32 %v1115, %v1117
  %v1119 = vrot.slane %v1112, %v1118
  %v1120 = vcombine.low %v939, %v945
  %v1122 = vunpack.c.l.s4 1983009808
  %v1123 = vunpack.c.0.s8 %v1122
  %v1124 = vlaneseq
  %v1125 = vshrl.u32 %v1124, 7
  %v1126 = vsub.s32 %v1123, %v1125
  %v1127 = vrot.slane %v1120, %v1126
  %v1128 = vcombine.low %v942, %v948
  %v1130 = vunpack.c.l.s4 1983009808
  %v1131 = vunpack.c.0.s8 %v1130
  %v1132 = vlaneseq
  %v1133 = vshrl.u32 %v1132, 7
  %v1134 = vsub.s32 %v1131, %v1133
  %v1135 = vrot.slane %v1128, %v1134
  %v1136 = vcombine.low %v1111, %v1119
  %v1137 = vcombine.high %v1111, %v1119
  %v1139 = vunpack.c.l.s4 1934713408
  %v1140 = vunpack.c.0.s8 %v1139
  %v1141 = vlaneseq
  %v1142 = vshrl.u32 %v1141, 7
  %v1143 = vsub.s32 %v1140, %v1142
  %v1144 = vrot.slane %v1136, %v1143
  %v1146 = vunpack.c.l.s4 1934713408
  %v1147 = vunpack.c.0.s8 %v1146
  %v1148 = vlaneseq
  %v1149 = vshrl.u32 %v1148, 7
  %v1150 = vsub.s32 %v1147, %v1149
  %v1151 = vrot.slane %v1137, %v1150
  %v1152 = vcombine.low %v1127, %v1135
  %v1153 = vcombine.high %v1127, %v1135
  %v1155 = vunpack.c.l.s4 1934713408
  %v1156 = vunpack.c.0.s8 %v1155
  %v1157 = vlaneseq
  %v1158 = vshrl.u32 %v1157, 7
  %v1159 = vsub.s32 %v1156, %v1158
  %v1160 = vrot.slane %v1152, %v1159
  %v1162 = vunpack.c.l.s4 1934713408
  %v1163 = vunpack.c.0.s8 %v1162
  %v1164 = vlaneseq
  %v1165 = vshrl.u32 %v1164, 7
  %v1166 = vsub.s32 %v1163, %v1165
  %v1167 = vrot.slane %v1153, %v1166
  %v1168 = vcombine.low %v1144, %v1160
  %v1169 = vcombine.high %v1144, %v1160
  %v1170 = vcombine.low %v1151, %v1167
  %v1171 = vcombine.high %v1151, %v1167
  %v1172 = vcombine.low %v801, %v955
  %v1174 = vunpack.c.l.s4 1983009808
  %v1175 = vunpack.c.0.s8 %v1174
  %v1176 = vlaneseq
  %v1177 = vshrl.u32 %v1176, 7
  %v1178 = vsub.s32 %v1175, %v1177
  %v1179 = vrot.slane %v1172, %v1178
  %v1180 = vcombine.low %v952, %v958
  %v1182 = vunpack.c.l.s4 1983009808
  %v1183 = vunpack.c.0.s8 %v1182
  %v1184 = vlaneseq
  %v1185 = vshrl.u32 %v1184, 7
  %v1186 = vsub.s32 %v1183, %v1185
  %v1187 = vrot.slane %v1180, %v1186
  %v1188 = vcombine.low %v961, %v967
  %v1190 = vunpack.c.l.s4 1983009808
  %v1191 = vunpack.c.0.s8 %v1190
  %v1192 = vlaneseq
  %v1193 = vshrl.u32 %v1192, 7
  %v1194 = vsub.s32 %v1191, %v1193
  %v1195 = vrot.slane %v1188, %v1194
  %v1196 = vcombine.low %v964, %v970
  %v1198 = vunpack.c.l.s4 1983009808
  %v1199 = vunpack.c.0.s8 %v1198
  %v1200 = vlaneseq
  %v1201 = vshrl.u32 %v1200, 7
  %v1202 = vsub.s32 %v1199, %v1201
  %v1203 = vrot.slane %v1196, %v1202
  %v1204 = vcombine.low %v1179, %v1187
  %v1205 = vcombine.high %v1179, %v1187
  %v1207 = vunpack.c.l.s4 1934713408
  %v1208 = vunpack.c.0.s8 %v1207
  %v1209 = vlaneseq
  %v1210 = vshrl.u32 %v1209, 7
  %v1211 = vsub.s32 %v1208, %v1210
  %v1212 = vrot.slane %v1204, %v1211
  %v1214 = vunpack.c.l.s4 1934713408
  %v1215 = vunpack.c.0.s8 %v1214
  %v1216 = vlaneseq
  %v1217 = vshrl.u32 %v1216, 7
  %v1218 = vsub.s32 %v1215, %v1217
  %v1219 = vrot.slane %v1205, %v1218
  %v1220 = vcombine.low %v1195, %v1203
  %v1221 = vcombine.high %v1195, %v1203
  %v1223 = vunpack.c.l.s4 1934713408
  %v1224 = vunpack.c.0.s8 %v1223
  %v1225 = vlaneseq
  %v1226 = vshrl.u32 %v1225, 7
  %v1227 = vsub.s32 %v1224, %v1226
  %v1228 = vrot.slane %v1220, %v1227
  %v1230 = vunpack.c.l.s4 1934713408
  %v1231 = vunpack.c.0.s8 %v1230
  %v1232 = vlaneseq
  %v1233 = vshrl.u32 %v1232, 7
  %v1234 = vsub.s32 %v1231, %v1233
  %v1235 = vrot.slane %v1221, %v1234
  %v1236 = vcombine.low %v1212, %v1228
  %v1237 = vcombine.high %v1212, %v1228
  %v1238 = vcombine.low %v1219, %v1235
  %v1239 = vcombine.high %v1219, %v1235
  %v1240 = vcombine.low %v840, %v977
  %v1242 = vunpack.c.l.s4 1983009808
  %v1243 = vunpack.c.0.s8 %v1242
  %v1244 = vlaneseq
  %v1245 = vshrl.u32 %v1244, 7
  %v1246 = vsub.s32 %v1243, %v1245
  %v1247 = vrot.slane %v1240, %v1246
  %v1248 = vcombine.low %v974, %v980
  %v1250 = vunpack.c.l.s4 1983009808
  %v1251 = vunpack.c.0.s8 %v1250
  %v1252 = vlaneseq
  %v1253 = vshrl.u32 %v1252, 7
  %v1254 = vsub.s32 %v1251, %v1253
  %v1255 = vrot.slane %v1248, %v1254
  %v1256 = vcombine.low %v983, %v989
  %v1258 = vunpack.c.l.s4 1983009808
  %v1259 = vunpack.c.0.s8 %v1258
  %v1260 = vlaneseq
  %v1261 = vshrl.u32 %v1260, 7
  %v1262 = vsub.s32 %v1259, %v1261
  %v1263 = vrot.slane %v1256, %v1262
  %v1264 = vcombine.low %v986, %v992
  %v1266 = vunpack.c.l.s4 1983009808
  %v1267 = vunpack.c.0.s8 %v1266
  %v1268 = vlaneseq
  %v1269 = vshrl.u32 %v1268, 7
  %v1270 = vsub.s32 %v1267, %v1269
  %v1271 = vrot.slane %v1264, %v1270
  %v1272 = vcombine.low %v1247, %v1255
  %v1273 = vcombine.high %v1247, %v1255
  %v1275 = vunpack.c.l.s4 1934713408
  %v1276 = vunpack.c.0.s8 %v1275
  %v1277 = vlaneseq
  %v1278 = vshrl.u32 %v1277, 7
  %v1279 = vsub.s32 %v1276, %v1278
  %v1280 = vrot.slane %v1272, %v1279
  %v1282 = vunpack.c.l.s4 1934713408
  %v1283 = vunpack.c.0.s8 %v1282
  %v1284 = vlaneseq
  %v1285 = vshrl.u32 %v1284, 7
  %v1286 = vsub.s32 %v1283, %v1285
  %v1287 = vrot.slane %v1273, %v1286
  %v1288 = vcombine.low %v1263, %v1271
  %v1289 = vcombine.high %v1263, %v1271
  %v1291 = vunpack.c.l.s4 1934713408
  %v1292 = vunpack.c.0.s8 %v1291
  %v1293 = vlaneseq
  %v1294 = vshrl.u32 %v1293, 7
  %v1295 = vsub.s32 %v1292, %v1294
  %v1296 = vrot.slane %v1288, %v1295
  %v1298 = vunpack.c.l.s4 1934713408
  %v1299 = vunpack.c.0.s8 %v1298
  %v1300 = vlaneseq
  %v1301 = vshrl.u32 %v1300, 7
  %v1302 = vsub.s32 %v1299, %v1301
  %v1303 = vrot.slane %v1289, %v1302
  %v1304 = vcombine.low %v1280, %v1296
  %v1305 = vcombine.high %v1280, %v1296
  %v1306 = vcombine.low %v1287, %v1303
  %v1307 = vcombine.high %v1287, %v1303
  %v1308 = vcombine.low %v842, %v999
  %v1310 = vunpack.c.l.s4 1983009808
  %v1311 = vunpack.c.0.s8 %v1310
  %v1312 = vlaneseq
  %v1313 = vshrl.u32 %v1312, 7
  %v1314 = vsub.s32 %v1311, %v1313
  %v1315 = vrot.slane %v1308, %v1314
  %v1316 = vcombine.low %v996, %v1002
  %v1318 = vunpack.c.l.s4 1983009808
  %v1319 = vunpack.c.0.s8 %v1318
  %v1320 = vlaneseq
  %v1321 = vshrl.u32 %v1320, 7
  %v1322 = vsub.s32 %v1319, %v1321
  %v1323 = vrot.slane %v1316, %v1322
  %v1324 = vcombine.low %v1005, %v1011
  %v1326 = vunpack.c.l.s4 1983009808
  %v1327 = vunpack.c.0.s8 %v1326
  %v1328 = vlaneseq
  %v1329 = vshrl.u32 %v1328, 7
  %v1330 = vsub.s32 %v1327, %v1329
  %v1331 = vrot.slane %v1324, %v1330
  %v1332 = vcombine.low %v1008, %v1014
  %v1334 = vunpack.c.l.s4 1983009808
  %v1335 = vunpack.c.0.s8 %v1334
  %v1336 = vlaneseq
  %v1337 = vshrl.u32 %v1336, 7
  %v1338 = vsub.s32 %v1335, %v1337
  %v1339 = vrot.slane %v1332, %v1338
  %v1340 = vcombine.low %v1315, %v1323
  %v1341 = vcombine.high %v1315, %v1323
  %v1343 = vunpack.c.l.s4 1934713408
  %v1344 = vunpack.c.0.s8 %v1343
  %v1345 = vlaneseq
  %v1346 = vshrl.u32 %v1345, 7
  %v1347 = vsub.s32 %v1344, %v1346
  %v1348 = vrot.slane %v1340, %v1347
  %v1350 = vunpack.c.l.s4 1934713408
  %v1351 = vunpack.c.0.s8 %v1350
  %v1352 = vlaneseq
  %v1353 = vshrl.u32 %v1352, 7
  %v1354 = vsub.s32 %v1351, %v1353
  %v1355 = vrot.slane %v1341, %v1354
  %v1356 = vcombine.low %v1331, %v1339
  %v1357 = vcombine.high %v1331, %v1339
  %v1359 = vunpack.c.l.s4 1934713408
  %v1360 = vunpack.c.0.s8 %v1359
  %v1361 = vlaneseq
  %v1362 = vshrl.u32 %v1361, 7
  %v1363 = vsub.s32 %v1360, %v1362
  %v1364 = vrot.slane %v1356, %v1363
  %v1366 = vunpack.c.l.s4 1934713408
  %v1367 = vunpack.c.0.s8 %v1366
  %v1368 = vlaneseq
  %v1369 = vshrl.u32 %v1368, 7
  %v1370 = vsub.s32 %v1367, %v1369
  %v1371 = vrot.slane %v1357, %v1370
  %v1372 = vcombine.low %v1348, %v1364
  %v1373 = vcombine.high %v1348, %v1364
  %v1374 = vcombine.low %v1355, %v1371
  %v1375 = vcombine.high %v1355, %v1371
  %v1376 = vcombine.low %v881, %v1021
  %v1378 = vunpack.c.l.s4 1983009808
  %v1379 = vunpack.c.0.s8 %v1378
  %v1380 = vlaneseq
  %v1381 = vshrl.u32 %v1380, 7
  %v1382 = vsub.s32 %v1379, %v1381
  %v1383 = vrot.slane %v1376, %v1382
  %v1384 = vcombine.low %v1018, %v1024
  %v1386 = vunpack.c.l.s4 1983009808
  %v1387 = vunpack.c.0.s8 %v1386
  %v1388 = vlaneseq
  %v1389 = vshrl.u32 %v1388, 7
  %v1390 = vsub.s32 %v1387, %v1389
  %v1391 = vrot.slane %v1384, %v1390
  %v1392 = vcombine.low %v1027, %v1033
  %v1394 = vunpack.c.l.s4 1983009808
  %v1395 = vunpack.c.0.s8 %v1394
  %v1396 = vlaneseq
  %v1397 = vshrl.u32 %v1396, 7
  %v1398 = vsub.s32 %v1395, %v1397
  %v1399 = vrot.slane %v1392, %v1398
  %v1400 = vcombine.low %v1030, %v1036
  %v1402 = vunpack.c.l.s4 1983009808
  %v1403 = vunpack.c.0.s8 %v1402
  %v1404 = vlaneseq
  %v1405 = vshrl.u32 %v1404, 7
  %v1406 = vsub.s32 %v1403, %v1405
  %v1407 = vrot.slane %v1400, %v1406
  %v1408 = vcombine.low %v1383, %v1391
  %v1409 = vcombine.high %v1383, %v1391
  %v1411 = vunpack.c.l.s4 1934713408
  %v1412 = vunpack.c.0.s8 %v1411
  %v1413 = vlaneseq
  %v1414 = vshrl.u32 %v1413, 7
  %v1415 = vsub.s32 %v1412, %v1414
  %v1416 = vrot.slane %v1408, %v1415
  %v1418 = vunpack.c.l.s4 1934713408
  %v1419 = vunpack.c.0.s8 %v1418
  %v1420 = vlaneseq
  %v1421 = vshrl.u32 %v1420, 7
  %v1422 = vsub.s32 %v1419, %v1421
  %v1423 = vrot.slane %v1409, %v1422
  %v1424 = vcombine.low %v1399, %v1407
  %v1425 = vcombine.high %v1399, %v1407
  %v1427 = vunpack.c.l.s4 1934713408
  %v1428 = vunpack.c.0.s8 %v1427
  %v1429 = vlaneseq
  %v1430 = vshrl.u32 %v1429, 7
  %v1431 = vsub.s32 %v1428, %v1430
  %v1432 = vrot.slane %v1424, %v1431
  %v1434 = vunpack.c.l.s4 1934713408
  %v1435 = vunpack.c.0.s8 %v1434
  %v1436 = vlaneseq
  %v1437 = vshrl.u32 %v1436, 7
  %v1438 = vsub.s32 %v1435, %v1437
  %v1439 = vrot.slane %v1425, %v1438
  %v1440 = vcombine.low %v1416, %v1432
  %v1441 = vcombine.high %v1416, %v1432
  %v1442 = vcombine.low %v1423, %v1439
  %v1443 = vcombine.high %v1423, %v1439
  %v1444 = vcombine.low %v883, %v1043
  %v1446 = vunpack.c.l.s4 1983009808
  %v1447 = vunpack.c.0.s8 %v1446
  %v1448 = vlaneseq
  %v1449 = vshrl.u32 %v1448, 7
  %v1450 = vsub.s32 %v1447, %v1449
  %v1451 = vrot.slane %v1444, %v1450
  %v1452 = vcombine.low %v1040, %v1046
  %v1454 = vunpack.c.l.s4 1983009808
  %v1455 = vunpack.c.0.s8 %v1454
  %v1456 = vlaneseq
  %v1457 = vshrl.u32 %v1456, 7
  %v1458 = vsub.s32 %v1455, %v1457
  %v1459 = vrot.slane %v1452, %v1458
  %v1460 = vcombine.low %v1049, %v1055
  %v1462 = vunpack.c.l.s4 1983009808
  %v1463 = vunpack.c.0.s8 %v1462
  %v1464 = vlaneseq
  %v1465 = vshrl.u32 %v1464, 7
  %v1466 = vsub.s32 %v1463, %v1465
  %v1467 = vrot.slane %v1460, %v1466
  %v1468 = vcombine.low %v1052, %v1058
  %v1470 = vunpack.c.l.s4 1983009808
  %v1471 = vunpack.c.0.s8 %v1470
  %v1472 = vlaneseq
  %v1473 = vshrl.u32 %v1472, 7
  %v1474 = vsub.s32 %v1471, %v1473
  %v1475 = vrot.slane %v1468, %v1474
  %v1476 = vcombine.low %v1451, %v1459
  %v1477 = vcombine.high %v1451, %v1459
  %v1479 = vunpack.c.l.s4 1934713408
  %v1480 = vunpack.c.0.s8 %v1479
  %v1481 = vlaneseq
  %v1482 = vshrl.u32 %v1481, 7
  %v1483 = vsub.s32 %v1480, %v1482
  %v1484 = vrot.slane %v1476, %v1483
  %v1486 = vunpack.c.l.s4 1934713408
  %v1487 = vunpack.c.0.s8 %v1486
  %v1488 = vlaneseq
  %v1489 = vshrl.u32 %v1488, 7
  %v1490 = vsub.s32 %v1487, %v1489
  %v1491 = vrot.slane %v1477, %v1490
  %v1492 = vcombine.low %v1467, %v1475
  %v1493 = vcombine.high %v1467, %v1475
  %v1495 = vunpack.c.l.s4 1934713408
  %v1496 = vunpack.c.0.s8 %v1495
  %v1497 = vlaneseq
  %v1498 = vshrl.u32 %v1497, 7
  %v1499 = vsub.s32 %v1496, %v1498
  %v1500 = vrot.slane %v1492, %v1499
  %v1502 = vunpack.c.l.s4 1934713408
  %v1503 = vunpack.c.0.s8 %v1502
  %v1504 = vlaneseq
  %v1505 = vshrl.u32 %v1504, 7
  %v1506 = vsub.s32 %v1503, %v1505
  %v1507 = vrot.slane %v1493, %v1506
  %v1508 = vcombine.low %v1484, %v1500
  %v1509 = vcombine.high %v1484, %v1500
  %v1510 = vcombine.low %v1491, %v1507
  %v1511 = vcombine.high %v1491, %v1507
  %v1512 = vcombine.low %v922, %v1065
  %v1514 = vunpack.c.l.s4 1983009808
  %v1515 = vunpack.c.0.s8 %v1514
  %v1516 = vlaneseq
  %v1517 = vshrl.u32 %v1516, 7
  %v1518 = vsub.s32 %v1515, %v1517
  %v1519 = vrot.slane %v1512, %v1518
  %v1520 = vcombine.low %v1062, %v1068
  %v1522 = vunpack.c.l.s4 1983009808
  %v1523 = vunpack.c.0.s8 %v1522
  %v1524 = vlaneseq
  %v1525 = vshrl.u32 %v1524, 7
  %v1526 = vsub.s32 %v1523, %v1525
  %v1527 = vrot.slane %v1520, %v1526
  %v1528 = vcombine.low %v1071, %v1077
  %v1530 = vunpack.c.l.s4 1983009808
  %v1531 = vunpack.c.0.s8 %v1530
  %v1532 = vlaneseq
  %v1533 = vshrl.u32 %v1532, 7
  %v1534 = vsub.s32 %v1531, %v1533
  %v1535 = vrot.slane %v1528, %v1534
  %v1536 = vcombine.low %v1074, %v1080
  %v1538 = vunpack.c.l.s4 1983009808
  %v1539 = vunpack.c.0.s8 %v1538
  %v1540 = vlaneseq
  %v1541 = vshrl.u32 %v1540, 7
  %v1542 = vsub.s32 %v1539, %v1541
  %v1543 = vrot.slane %v1536, %v1542
  %v1544 = vcombine.low %v1519, %v1527
  %v1545 = vcombine.high %v1519, %v1527
  %v1547 = vunpack.c.l.s4 1934713408
  %v1548 = vunpack.c.0.s8 %v1547
  %v1549 = vlaneseq
  %v1550 = vshrl.u32 %v1549, 7
  %v1551 = vsub.s32 %v1548, %v1550
  %v1552 = vrot.slane %v1544, %v1551
  %v1554 = vunpack.c.l.s4 1934713408
  %v1555 = vunpack.c.0.s8 %v1554
  %v1556 = vlaneseq
  %v1557 = vshrl.u32 %v1556, 7
  %v1558 = vsub.s32 %v1555, %v1557
  %v1559 = vrot.slane %v1545, %v1558
  %v1560 = vcombine.low %v1535, %v1543
  %v1561 = vcombine.high %v1535, %v1543
  %v1563 = vunpack.c.l.s4 1934713408
  %v1564 = vunpack.c.0.s8 %v1563
  %v1565 = vlaneseq
  %v1566 = vshrl.u32 %v1565, 7
  %v1567 = vsub.s32 %v1564, %v1566
  %v1568 = vrot.slane %v1560, %v1567
  %v1570 = vunpack.c.l.s4 1934713408
  %v1571 = vunpack.c.0.s8 %v1570
  %v1572 = vlaneseq
  %v1573 = vshrl.u32 %v1572, 7
  %v1574 = vsub.s32 %v1571, %v1573
  %v1575 = vrot.slane %v1561, %v1574
  %v1576 = vcombine.low %v1552, %v1568
  %v1577 = vcombine.high %v1552, %v1568
  %v1578 = vcombine.low %v1559, %v1575
  %v1579 = vcombine.high %v1559, %v1575
  %v1580 = vcombine.low %v924, %v1087
  %v1582 = vunpack.c.l.s4 1983009808
  %v1583 = vunpack.c.0.s8 %v1582
  %v1584 = vlaneseq
  %v1585 = vshrl.u32 %v1584, 7
  %v1586 = vsub.s32 %v1583, %v1585
  %v1587 = vrot.slane %v1580, %v1586
  %v1588 = vcombine.low %v1084, %v1090
  %v1590 = vunpack.c.l.s4 1983009808
  %v1591 = vunpack.c.0.s8 %v1590
  %v1592 = vlaneseq
  %v1593 = vshrl.u32 %v1592, 7
  %v1594 = vsub.s32 %v1591, %v1593
  %v1595 = vrot.slane %v1588, %v1594
  %v1596 = vcombine.low %v1093, %v1099
  %v1598 = vunpack.c.l.s4 1983009808
  %v1599 = vunpack.c.0.s8 %v1598
  %v1600 = vlaneseq
  %v1601 = vshrl.u32 %v1600, 7
  %v1602 = vsub.s32 %v1599, %v1601
  %v1603 = vrot.slane %v1596, %v1602
  %v1604 = vcombine.low %v1096, %v1102
  %v1606 = vunpack.c.l.s4 1983009808
  %v1607 = vunpack.c.0.s8 %v1606
  %v1608 = vlaneseq
  %v1609 = vshrl.u32 %v1608, 7
  %v1610 = vsub.s32 %v1607, %v1609
  %v1611 = vrot.slane %v1604, %v1610
  %v1612 = vcombine.low %v1587, %v1595
  %v1613 = vcombine.high %v1587, %v1595
  %v1615 = vunpack.c.l.s4 1934713408
  %v1616 = vunpack.c.0.s8 %v1615
  %v1617 = vlaneseq
  %v1618 = vshrl.u32 %v1617, 7
  %v1619 = vsub.s32 %v1616, %v1618
  %v1620 = vrot.slane %v1612, %v1619
  %v1622 = vunpack.c.l.s4 1934713408
  %v1623 = vunpack.c.0.s8 %v1622
  %v1624 = vlaneseq
  %v1625 = vshrl.u32 %v1624, 7
  %v1626 = vsub.s32 %v1623, %v1625
  %v1627 = vrot.slane %v1613, %v1626
  %v1628 = vcombine.low %v1603, %v1611
  %v1629 = vcombine.high %v1603, %v1611
  %v1631 = vunpack.c.l.s4 1934713408
  %v1632 = vunpack.c.0.s8 %v1631
  %v1633 = vlaneseq
  %v1634 = vshrl.u32 %v1633, 7
  %v1635 = vsub.s32 %v1632, %v1634
  %v1636 = vrot.slane %v1628, %v1635
  %v1638 = vunpack.c.l.s4 1934713408
  %v1639 = vunpack.c.0.s8 %v1638
  %v1640 = vlaneseq
  %v1641 = vshrl.u32 %v1640, 7
  %v1642 = vsub.s32 %v1639, %v1641
  %v1643 = vrot.slane %v1629, %v1642
  %v1644 = vcombine.low %v1620, %v1636
  %v1645 = vcombine.high %v1620, %v1636
  %v1646 = vcombine.low %v1627, %v1643
  %v1647 = vcombine.high %v1627, %v1643
  %vm1648 = vcmask 654848
  %v1649 = vsel %vm1648, %v397, -inf
  %v1650 = vsel %vm1648, %v402, -inf
  %v1651 = vsel %vm1648, %v407, -inf
  %v1652 = vsel %vm1648, %v412, -inf
  %v1653 = vsel %vm1648, %v417, -inf
  %v1654 = vmax.f32 %v1649, %v1653
  %v1655 = vsel %vm1648, %v422, -inf
  %v1656 = vmax.f32 %v1650, %v1655
  %v1657 = vsel %vm1648, %v427, -inf
  %v1658 = vmax.f32 %v1651, %v1657
  %v1659 = vsel %vm1648, %v432, -inf
  %v1660 = vmax.f32 %v1652, %v1659
  %v1661 = vmax.f32 %v1654, %v1656
  %v1662 = vmax.f32 %v1658, %v1660
  %v1663 = vmax.f32 %v1661, %v1662
  %v1664 = vrot.slane %v1663, 4
  %v1665 = vmax.f32 %v1663, %v1664
  %v1666 = vrot.slane %v1665, 2
  %v1667 = vmax.f32 %v1665, %v1666
  %v1668 = vrot.slane %v1667, 1
  %v1669 = vmax.f32 %v1667, %v1668
  %v1670 = vsub.f32 %v397, %v1669
  %v1671 = vsub.f32 %v402, %v1669
  %v1672 = vsub.f32 %v407, %v1669
  %v1673 = vsub.f32 %v412, %v1669
  %v1674 = vsub.f32 %v417, %v1669
  %v1675 = vsub.f32 %v422, %v1669
  %v1676 = vsub.f32 %v427, %v1669
  %v1677 = vsub.f32 %v432, %v1669
  %v1678 = vmul.f32 %v1670, 1.442695
  %v1679 = vpow.pop %v1678
  %v1680 = vmul.f32 %v1671, 1.442695
  %v1681 = vpow.pop %v1680
  %v1682 = vmul.f32 %v1672, 1.442695
  %v1683 = vpow.pop %v1682
  %v1684 = vmul.f32 %v1673, 1.442695
  %v1685 = vpow.pop %v1684
  %v1686 = vmul.f32 %v1674, 1.442695
  %v1687 = vpow.pop %v1686
  %v1688 = vmul.f32 %v1675, 1.442695
  %v1689 = vpow.pop %v1688
  %v1690 = vmul.f32 %v1676, 1.442695
  %v1691 = vpow.pop %v1690
  %v1692 = vmul.f32 %v1677, 1.442695
  %v1693 = vpow.pop %v1692
  %v1694 = vsel %vm1648, %v1679, 0.0
  %v1695 = vsel %vm1648, %v1681, 0.0
  %v1696 = vadd.f32 %v1694, %v1695
  %v1697 = vsel %vm1648, %v1683, 0.0
  %v1698 = vadd.f32 %v1696, %v1697
  %v1699 = vsel %vm1648, %v1685, 0.0
  %v1700 = vadd.f32 %v1698, %v1699
  %v1701 = vsel %vm1648, %v1687, 0.0
  %v1702 = vadd.f32 %v1700, %v1701
  %v1703 = vsel %vm1648, %v1689, 0.0
  %v1704 = vadd.f32 %v1702, %v1703
  %v1705 = vsel %vm1648, %v1691, 0.0
  %v1706 = vadd.f32 %v1704, %v1705
  %v1707 = vsel %vm1648, %v1693, 0.0
  %v1708 = vadd.f32 %v1706, %v1707
  %v1709 = vrot.slane %v1708, 4
  %v1710 = vadd.f32 %v1708, %v1709
  %v1711 = vrot.slane %v1710, 2
  %v1712 = vadd.f32 %v1710, %v1711
  %v1713 = vrot.slane %v1712, 1
  %v1714 = vadd.f32 %v1712, %v1713
  %v1715 = vrcp.pop %v1714
  %1716 = vxpose.xlu0.b32.start [1/16] %v484, 128
  %1717 = vxpose.xlu0.b32.cont [2/16] %v486, 128
  %1718 = vxpose.xlu0.b32.cont [3/16] %v488, 128
  %1719 = vxpose.xlu0.b32.cont [4/16] %v490, 128
  %1720 = vxpose.xlu0.b32.cont [5/16] %v492, 128
  %1721 = vxpose.xlu0.b32.cont [6/16] %v494, 128
  %1722 = vxpose.xlu0.b32.cont [7/16] %v496, 128
  %1723 = vxpose.xlu0.b32.cont [8/16] %v498, 128
  %1724 = vxpose.xlu0.b32.cont [9/16] 0.0, 128
  %1725 = vxpose.xlu0.b32.cont [10/16] 0.0, 128
  %1726 = vxpose.xlu0.b32.cont [11/16] 0.0, 128
  %1727 = vxpose.xlu0.b32.cont [12/16] 0.0, 128
  %1728 = vxpose.xlu0.b32.cont [13/16] 0.0, 128
  %1729 = vxpose.xlu0.b32.cont [14/16] 0.0, 128
  %1730 = vxpose.xlu0.b32.cont [15/16] 0.0, 128
  %1731 = vxpose.xlu0.b32.end [16/16] 0.0, 128
  %v1732 = vpop.trf.xlu0
  %v1733 = vpop.trf.xlu0
  %v1734 = vpop.trf.xlu0
  %v1735 = vpop.trf.xlu0
  %v1736 = vpop.trf.xlu0
  %v1737 = vpop.trf.xlu0
  %v1738 = vpop.trf.xlu0
  %v1739 = vpop.trf.xlu0
  %v1740 = vpop.trf.xlu0
  %v1741 = vpop.trf.xlu0
  %v1742 = vpop.trf.xlu0
  %v1743 = vpop.trf.xlu0
  %v1744 = vpop.trf.xlu0
  %v1745 = vpop.trf.xlu0
  %v1746 = vpop.trf.xlu0
  %v1747 = vpop.trf.xlu0
  %1756 = vrot.lane.b32.xlu0 %v1679, 64
  %v1757 = vpop.permute.xlu0 %1756
  %1758 = vrot.lane.b32.xlu0 %v1681, 64
  %v1759 = vpop.permute.xlu0 %1758
  %1760 = vrot.lane.b32.xlu0 %v1683, 64
  %v1761 = vpop.permute.xlu0 %1760
  %1762 = vrot.lane.b32.xlu0 %v1685, 64
  %v1763 = vpop.permute.xlu0 %1762
  %1764 = vrot.lane.b32.xlu0 %v1687, 64
  %v1765 = vpop.permute.xlu0 %1764
  %1766 = vrot.lane.b32.xlu0 %v1689, 64
  %v1767 = vpop.permute.xlu0 %1766
  %1768 = vrot.lane.b32.xlu0 %v1691, 64
  %v1769 = vpop.permute.xlu0 %1768
  %1770 = vrot.lane.b32.xlu0 %v1693, 64
  %v1771 = vpop.permute.xlu0 %1770
  %v1781 = vsel %vm760, %v1732, 0
  %1783 = vmatprep.subr.mxu0 0.0
  %1784 = vmatpush1.msra.mxu0 %v1757
  %1785 = vmatprep.subr.mxu0 0.0
  %1786 = vmatpush1.msra.mxu0 %v1759
  %1787 = vmatprep.subr.mxu0 0.0
  %1788 = vmatpush1.msra.mxu0 %v1761
  %1789 = vmatprep.subr.mxu0 0.0
  %1790 = vmatpush1.msra.mxu0 %v1763
  %1791 = vmatprep.subr.mxu0 0.0
  %1792 = vmatpush1.msra.mxu0 %v1765
  %1793 = vmatprep.subr.mxu0 0.0
  %1794 = vmatpush1.msra.mxu0 %v1767
  %1795 = vmatprep.subr.mxu0 0.0
  %1796 = vmatpush1.msra.mxu0 %v1769
  %1797 = vmatprep.subr.mxu0 0.0
  %1798 = vmatpush1.msra.mxu0 %v1771
  %1799 = vmatprep.subr.mxu0 0.0
  %1800 = vmatpush1.msra.mxu0 0.0
  %1801 = vmatprep.subr.mxu0 0.0
  %1802 = vmatpush1.msra.mxu0 0.0
  %1803 = vmatprep.subr.mxu0 0.0
  %1804 = vmatpush1.msra.mxu0 0.0
  %1805 = vmatprep.subr.mxu0 0.0
  %1806 = vmatpush1.msra.mxu0 0.0
  %1807 = vmatprep.subr.mxu0 0.0
  %1808 = vmatpush1.msra.mxu0 0.0
  %1809 = vmatprep.subr.mxu0 0.0
  %1810 = vmatpush1.msra.mxu0 0.0
  %1811 = vmatprep.subr.mxu0 0.0
  %1812 = vmatpush1.msra.mxu0 0.0
  %1813 = vmatprep.subr.mxu0 0.0
  %1814 = vmatpush1.msra.mxu0 0.0
  %1815 = vmatprep.subr.mxu0 0.0
  %1816 = vmatpush1.msra.mxu0 0.0
  %1817 = vmatprep.subr.mxu0 0.0
  %1818 = vmatpush1.msra.mxu0 0.0
  %1819 = vmatprep.subr.mxu0 0.0
  %1820 = vmatpush1.msra.mxu0 0.0
  %1821 = vmatprep.subr.mxu0 0.0
  %1822 = vmatpush1.msra.mxu0 0.0
  %1823 = vmatprep.subr.mxu0 0.0
  %1824 = vmatpush1.msra.mxu0 0.0
  %1825 = vmatprep.subr.mxu0 0.0
  %1826 = vmatpush1.msra.mxu0 0.0
  %1827 = vmatprep.subr.mxu0 0.0
  %1828 = vmatpush1.msra.mxu0 0.0
  %1829 = vmatprep.subr.mxu0 0.0
  %1830 = vmatpush1.msra.mxu0 0.0
  %1831 = vmatprep.subr.mxu0 0.0
  %1832 = vmatpush1.msra.mxu0 0.0
  %1833 = vmatprep.subr.mxu0 0.0
  %1834 = vmatpush1.msra.mxu0 0.0
  %1835 = vmatprep.subr.mxu0 0.0
  %1836 = vmatpush1.msra.mxu0 0.0
  %1837 = vmatprep.subr.mxu0 0.0
  %1838 = vmatpush1.msra.mxu0 0.0
  %1839 = vmatprep.subr.mxu0 0.0
  %1840 = vmatpush1.msra.mxu0 0.0
  %1841 = vmatprep.subr.mxu0 0.0
  %1842 = vmatpush1.msra.mxu0 0.0
  %1843 = vmatprep.subr.mxu0 0.0
  %1844 = vmatpush1.msra.mxu0 0.0
  %1845 = vmatprep.subr.mxu0 0.0
  %1846 = vmatpush1.msra.mxu0 0.0
  %1847 = vmatprep.mubr.f32.mxu0 0.0
  %1848 = vmatmul.mubr.f32.gmra.mrb[0].mxu0 %v1781
  %v1849 = vpop.f32.mrb[0].mxu0
  %v1850 = vadd.f32 0.0, %v1849
  %v1851 = vpop.f32.mrb[0].mxu0
  %1852 = vdwg.mxu0
  %1854 = vrot.lane.b32.xlu0 %v1715, 64
  %v1855 = vpop.permute.xlu0 %1854
  %v1857 = vmul.f32 %v1850, %v1855
  %v1858 = vlaneseq
  %v1859 = vshrl.u32 %v1858, 7
  %v1860 = vsub.s32 0, %v1859
  %v1861 = vrot.slane %v1857, %v1860
  %v1862 = vadd.f32 %v1168, %v1861
  %v1863 = vadd.f32 %v1236, %v1861
  %v1864 = vadd.f32 %v1304, %v1861
  %v1865 = vadd.f32 %v1372, %v1861
  %v1866 = vadd.f32 %v1440, %v1861
  %v1867 = vadd.f32 %v1508, %v1861
  %v1868 = vadd.f32 %v1576, %v1861
  %v1869 = vadd.f32 %v1644, %v1861
  %v1870 = vlaneseq
  %v1871 = vshrl.u32 %v1870, 7
  %v1872 = vsub.s32 1, %v1871
  %v1873 = vrot.slane %v1857, %v1872
  %v1874 = vadd.f32 %v1169, %v1873
  %v1875 = vadd.f32 %v1237, %v1873
  %v1876 = vadd.f32 %v1305, %v1873
  %v1877 = vadd.f32 %v1373, %v1873
  %v1878 = vadd.f32 %v1441, %v1873
  %v1879 = vadd.f32 %v1509, %v1873
  %v1880 = vadd.f32 %v1577, %v1873
  %v1881 = vadd.f32 %v1645, %v1873
  %1890 = vrot.lane.b32.xlu0 %v1874, 16
  %v1891 = vpop.permute.xlu0 %1890
  %1892 = vrot.lane.b32.xlu0 %v1875, 16
  %v1893 = vpop.permute.xlu0 %1892
  %1894 = vrot.lane.b32.xlu0 %v1876, 16
  %v1895 = vpop.permute.xlu0 %1894
  %1896 = vrot.lane.b32.xlu0 %v1877, 16
  %v1897 = vpop.permute.xlu0 %1896
  %1898 = vrot.lane.b32.xlu0 %v1878, 16
  %v1899 = vpop.permute.xlu0 %1898
  %1900 = vrot.lane.b32.xlu0 %v1879, 16
  %v1901 = vpop.permute.xlu0 %1900
  %1902 = vrot.lane.b32.xlu0 %v1880, 16
  %v1903 = vpop.permute.xlu0 %1902
  %1904 = vrot.lane.b32.xlu0 %v1881, 16
  %v1905 = vpop.permute.xlu0 %1904
  %vm1914 = vcmask 130048
  %v1915 = vsel %vm1914, %v1862, %v1891
  %v1916 = vsel %vm1914, %v1863, %v1893
  %v1917 = vsel %vm1914, %v1864, %v1895
  %v1918 = vsel %vm1914, %v1865, %v1897
  %v1919 = vsel %vm1914, %v1866, %v1899
  %v1920 = vsel %vm1914, %v1867, %v1901
  %v1921 = vsel %vm1914, %v1868, %v1903
  %v1922 = vsel %vm1914, %v1869, %v1905
  %v1923 = vsel %vm1648, %v437, -inf
  %v1924 = vsel %vm1648, %v442, -inf
  %v1925 = vsel %vm1648, %v447, -inf
  %v1926 = vsel %vm1648, %v452, -inf
  %v1927 = vsel %vm1648, %v457, -inf
  %v1928 = vmax.f32 %v1923, %v1927
  %v1929 = vsel %vm1648, %v462, -inf
  %v1930 = vmax.f32 %v1924, %v1929
  %v1931 = vsel %vm1648, %v467, -inf
  %v1932 = vmax.f32 %v1925, %v1931
  %v1933 = vsel %vm1648, %v472, -inf
  %v1934 = vmax.f32 %v1926, %v1933
  %v1935 = vmax.f32 %v1928, %v1930
  %v1936 = vmax.f32 %v1932, %v1934
  %v1937 = vmax.f32 %v1935, %v1936
  %v1938 = vrot.slane %v1937, 4
  %v1939 = vmax.f32 %v1937, %v1938
  %v1940 = vrot.slane %v1939, 2
  %v1941 = vmax.f32 %v1939, %v1940
  %v1942 = vrot.slane %v1941, 1
  %v1943 = vmax.f32 %v1941, %v1942
  %v1944 = vsub.f32 %v437, %v1943
  %v1945 = vsub.f32 %v442, %v1943
  %v1946 = vsub.f32 %v447, %v1943
  %v1947 = vsub.f32 %v452, %v1943
  %v1948 = vsub.f32 %v457, %v1943
  %v1949 = vsub.f32 %v462, %v1943
  %v1950 = vsub.f32 %v467, %v1943
  %v1951 = vsub.f32 %v472, %v1943
  %v1952 = vmul.f32 %v1944, 1.442695
  %v1953 = vpow.pop %v1952
  %v1954 = vmul.f32 %v1945, 1.442695
  %v1955 = vpow.pop %v1954
  %v1956 = vmul.f32 %v1946, 1.442695
  %v1957 = vpow.pop %v1956
  %v1958 = vmul.f32 %v1947, 1.442695
  %v1959 = vpow.pop %v1958
  %v1960 = vmul.f32 %v1948, 1.442695
  %v1961 = vpow.pop %v1960
  %v1962 = vmul.f32 %v1949, 1.442695
  %v1963 = vpow.pop %v1962
  %v1964 = vmul.f32 %v1950, 1.442695
  %v1965 = vpow.pop %v1964
  %v1966 = vmul.f32 %v1951, 1.442695
  %v1967 = vpow.pop %v1966
  %v1968 = vsel %vm1648, %v1953, 0.0
  %v1969 = vsel %vm1648, %v1955, 0.0
  %v1970 = vadd.f32 %v1968, %v1969
  %v1971 = vsel %vm1648, %v1957, 0.0
  %v1972 = vadd.f32 %v1970, %v1971
  %v1973 = vsel %vm1648, %v1959, 0.0
  %v1974 = vadd.f32 %v1972, %v1973
  %v1975 = vsel %vm1648, %v1961, 0.0
  %v1976 = vadd.f32 %v1974, %v1975
  %v1977 = vsel %vm1648, %v1963, 0.0
  %v1978 = vadd.f32 %v1976, %v1977
  %v1979 = vsel %vm1648, %v1965, 0.0
  %v1980 = vadd.f32 %v1978, %v1979
  %v1981 = vsel %vm1648, %v1967, 0.0
  %v1982 = vadd.f32 %v1980, %v1981
  %v1983 = vrot.slane %v1982, 4
  %v1984 = vadd.f32 %v1982, %v1983
  %v1985 = vrot.slane %v1984, 2
  %v1986 = vadd.f32 %v1984, %v1985
  %v1987 = vrot.slane %v1986, 1
  %v1988 = vadd.f32 %v1986, %v1987
  %v1989 = vrcp.pop %v1988
  %1990 = vrot.lane.b32.xlu0 %v437, 48
  %v1991 = vpop.permute.xlu0 %1990
  %1992 = vrot.lane.b32.xlu0 %v442, 48
  %v1993 = vpop.permute.xlu0 %1992
  %1994 = vrot.lane.b32.xlu0 %v447, 48
  %v1995 = vpop.permute.xlu0 %1994
  %1996 = vrot.lane.b32.xlu0 %v452, 48
  %v1997 = vpop.permute.xlu0 %1996
  %1998 = vrot.lane.b32.xlu0 %v457, 48
  %v1999 = vpop.permute.xlu0 %1998
  %2000 = vrot.lane.b32.xlu0 %v462, 48
  %v2001 = vpop.permute.xlu0 %2000
  %2002 = vrot.lane.b32.xlu0 %v467, 48
  %v2003 = vpop.permute.xlu0 %2002
  %2004 = vrot.lane.b32.xlu0 %v472, 48
  %v2005 = vpop.permute.xlu0 %2004
  %2014 = vxpose.xlu0.b32.start [1/16] %v1991, 128
  %2015 = vxpose.xlu0.b32.cont [2/16] %v1993, 128
  %2016 = vxpose.xlu0.b32.cont [3/16] %v1995, 128
  %2017 = vxpose.xlu0.b32.cont [4/16] %v1997, 128
  %2018 = vxpose.xlu0.b32.cont [5/16] %v1999, 128
  %2019 = vxpose.xlu0.b32.cont [6/16] %v2001, 128
  %2020 = vxpose.xlu0.b32.cont [7/16] %v2003, 128
  %2021 = vxpose.xlu0.b32.cont [8/16] %v2005, 128
  %2022 = vxpose.xlu0.b32.cont [9/16] 0.0, 128
  %2023 = vxpose.xlu0.b32.cont [10/16] 0.0, 128
  %2024 = vxpose.xlu0.b32.cont [11/16] 0.0, 128
  %2025 = vxpose.xlu0.b32.cont [12/16] 0.0, 128
  %2026 = vxpose.xlu0.b32.cont [13/16] 0.0, 128
  %2027 = vxpose.xlu0.b32.cont [14/16] 0.0, 128
  %2028 = vxpose.xlu0.b32.cont [15/16] 0.0, 128
  %2029 = vxpose.xlu0.b32.end [16/16] 0.0, 128
  %v2030 = vpop.trf.xlu0
  %v2031 = vpop.trf.xlu0
  %v2032 = vpop.trf.xlu0
  %v2033 = vpop.trf.xlu0
  %v2034 = vpop.trf.xlu0
  %v2035 = vpop.trf.xlu0
  %v2036 = vpop.trf.xlu0
  %v2037 = vpop.trf.xlu0
  %v2038 = vpop.trf.xlu0
  %v2039 = vpop.trf.xlu0
  %v2040 = vpop.trf.xlu0
  %v2041 = vpop.trf.xlu0
  %v2042 = vpop.trf.xlu0
  %v2043 = vpop.trf.xlu0
  %v2044 = vpop.trf.xlu0
  %v2045 = vpop.trf.xlu0
  %2054 = vrot.lane.b32.xlu0 %v1953, 64
  %v2055 = vpop.permute.xlu0 %2054
  %2056 = vrot.lane.b32.xlu0 %v1955, 64
  %v2057 = vpop.permute.xlu0 %2056
  %2058 = vrot.lane.b32.xlu0 %v1957, 64
  %v2059 = vpop.permute.xlu0 %2058
  %2060 = vrot.lane.b32.xlu0 %v1959, 64
  %v2061 = vpop.permute.xlu0 %2060
  %2062 = vrot.lane.b32.xlu0 %v1961, 64
  %v2063 = vpop.permute.xlu0 %2062
  %2064 = vrot.lane.b32.xlu0 %v1963, 64
  %v2065 = vpop.permute.xlu0 %2064
  %2066 = vrot.lane.b32.xlu0 %v1965, 64
  %v2067 = vpop.permute.xlu0 %2066
  %2068 = vrot.lane.b32.xlu0 %v1967, 64
  %v2069 = vpop.permute.xlu0 %2068
  %v2079 = vsel %vm760, %v2030, 0
  %2081 = vmatprep.subr.mxu0 0.0
  %2082 = vmatpush1.msra.mxu0 %v2055
  %2083 = vmatprep.subr.mxu0 0.0
  %2084 = vmatpush1.msra.mxu0 %v2057
  %2085 = vmatprep.subr.mxu0 0.0
  %2086 = vmatpush1.msra.mxu0 %v2059
  %2087 = vmatprep.subr.mxu0 0.0
  %2088 = vmatpush1.msra.mxu0 %v2061
  %2089 = vmatprep.subr.mxu0 0.0
  %2090 = vmatpush1.msra.mxu0 %v2063
  %2091 = vmatprep.subr.mxu0 0.0
  %2092 = vmatpush1.msra.mxu0 %v2065
  %2093 = vmatprep.subr.mxu0 0.0
  %2094 = vmatpush1.msra.mxu0 %v2067
  %2095 = vmatprep.subr.mxu0 0.0
  %2096 = vmatpush1.msra.mxu0 %v2069
  %2097 = vmatprep.subr.mxu0 0.0
  %2098 = vmatpush1.msra.mxu0 0.0
  %2099 = vmatprep.subr.mxu0 0.0
  %2100 = vmatpush1.msra.mxu0 0.0
  %2101 = vmatprep.subr.mxu0 0.0
  %2102 = vmatpush1.msra.mxu0 0.0
  %2103 = vmatprep.subr.mxu0 0.0
  %2104 = vmatpush1.msra.mxu0 0.0
  %2105 = vmatprep.subr.mxu0 0.0
  %2106 = vmatpush1.msra.mxu0 0.0
  %2107 = vmatprep.subr.mxu0 0.0
  %2108 = vmatpush1.msra.mxu0 0.0
  %2109 = vmatprep.subr.mxu0 0.0
  %2110 = vmatpush1.msra.mxu0 0.0
  %2111 = vmatprep.subr.mxu0 0.0
  %2112 = vmatpush1.msra.mxu0 0.0
  %2113 = vmatprep.subr.mxu0 0.0
  %2114 = vmatpush1.msra.mxu0 0.0
  %2115 = vmatprep.subr.mxu0 0.0
  %2116 = vmatpush1.msra.mxu0 0.0
  %2117 = vmatprep.subr.mxu0 0.0
  %2118 = vmatpush1.msra.mxu0 0.0
  %2119 = vmatprep.subr.mxu0 0.0
  %2120 = vmatpush1.msra.mxu0 0.0
  %2121 = vmatprep.subr.mxu0 0.0
  %2122 = vmatpush1.msra.mxu0 0.0
  %2123 = vmatprep.subr.mxu0 0.0
  %2124 = vmatpush1.msra.mxu0 0.0
  %2125 = vmatprep.subr.mxu0 0.0
  %2126 = vmatpush1.msra.mxu0 0.0
  %2127 = vmatprep.subr.mxu0 0.0
  %2128 = vmatpush1.msra.mxu0 0.0
  %2129 = vmatprep.subr.mxu0 0.0
  %2130 = vmatpush1.msra.mxu0 0.0
  %2131 = vmatprep.subr.mxu0 0.0
  %2132 = vmatpush1.msra.mxu0 0.0
  %2133 = vmatprep.subr.mxu0 0.0
  %2134 = vmatpush1.msra.mxu0 0.0
  %2135 = vmatprep.subr.mxu0 0.0
  %2136 = vmatpush1.msra.mxu0 0.0
  %2137 = vmatprep.subr.mxu0 0.0
  %2138 = vmatpush1.msra.mxu0 0.0
  %2139 = vmatprep.subr.mxu0 0.0
  %2140 = vmatpush1.msra.mxu0 0.0
  %2141 = vmatprep.subr.mxu0 0.0
  %2142 = vmatpush1.msra.mxu0 0.0
  %2143 = vmatprep.subr.mxu0 0.0
  %2144 = vmatpush1.msra.mxu0 0.0
  %2145 = vmatprep.mubr.f32.mxu0 0.0
  %2146 = vmatmul.mubr.f32.gmra.mrb[0].mxu0 %v2079
  %v2147 = vpop.f32.mrb[0].mxu0
  %v2148 = vadd.f32 0.0, %v2147
  %v2149 = vpop.f32.mrb[0].mxu0
  %2150 = vdwg.mxu0
  %2152 = vrot.lane.b32.xlu0 %v1989, 64
  %v2153 = vpop.permute.xlu0 %2152
  %v2155 = vmul.f32 %v2148, %v2153
  %v2156 = vlaneseq
  %v2157 = vshrl.u32 %v2156, 7
  %v2158 = vsub.s32 0, %v2157
  %v2159 = vrot.slane %v2155, %v2158
  %v2160 = vadd.f32 %v1170, %v2159
  %v2161 = vadd.f32 %v1238, %v2159
  %v2162 = vadd.f32 %v1306, %v2159
  %v2163 = vadd.f32 %v1374, %v2159
  %v2164 = vadd.f32 %v1442, %v2159
  %v2165 = vadd.f32 %v1510, %v2159
  %v2166 = vadd.f32 %v1578, %v2159
  %v2167 = vadd.f32 %v1646, %v2159
  %v2168 = vlaneseq
  %v2169 = vshrl.u32 %v2168, 7
  %v2170 = vsub.s32 1, %v2169
  %v2171 = vrot.slane %v2155, %v2170
  %v2172 = vadd.f32 %v1171, %v2171
  %v2173 = vadd.f32 %v1239, %v2171
  %v2174 = vadd.f32 %v1307, %v2171
  %v2175 = vadd.f32 %v1375, %v2171
  %v2176 = vadd.f32 %v1443, %v2171
  %v2177 = vadd.f32 %v1511, %v2171
  %v2178 = vadd.f32 %v1579, %v2171
  %v2179 = vadd.f32 %v1647, %v2171
  %2188 = vrot.lane.b32.xlu0 %v2172, 16
  %v2189 = vpop.permute.xlu0 %2188
  %2190 = vrot.lane.b32.xlu0 %v2173, 16
  %v2191 = vpop.permute.xlu0 %2190
  %2192 = vrot.lane.b32.xlu0 %v2174, 16
  %v2193 = vpop.permute.xlu0 %2192
  %2194 = vrot.lane.b32.xlu0 %v2175, 16
  %v2195 = vpop.permute.xlu0 %2194
  %2196 = vrot.lane.b32.xlu0 %v2176, 16
  %v2197 = vpop.permute.xlu0 %2196
  %2198 = vrot.lane.b32.xlu0 %v2177, 16
  %v2199 = vpop.permute.xlu0 %2198
  %2200 = vrot.lane.b32.xlu0 %v2178, 16
  %v2201 = vpop.permute.xlu0 %2200
  %2202 = vrot.lane.b32.xlu0 %v2179, 16
  %v2203 = vpop.permute.xlu0 %2202
  %v2212 = vsel %vm1914, %v2160, %v2189
  %v2213 = vsel %vm1914, %v2161, %v2191
  %v2214 = vsel %vm1914, %v2162, %v2193
  %v2215 = vsel %vm1914, %v2163, %v2195
  %v2216 = vsel %vm1914, %v2164, %v2197
  %v2217 = vsel %vm1914, %v2165, %v2199
  %v2218 = vsel %vm1914, %v2166, %v2201
  %v2219 = vsel %vm1914, %v2167, %v2203
  %2236 = vrot.lane.b32.xlu0 %v1915, 16
  %v2237 = vpop.permute.xlu0 %2236
  %2238 = vrot.lane.b32.xlu0 %v1916, 16
  %v2239 = vpop.permute.xlu0 %2238
  %2240 = vrot.lane.b32.xlu0 %v1917, 16
  %v2241 = vpop.permute.xlu0 %2240
  %2242 = vrot.lane.b32.xlu0 %v1918, 16
  %v2243 = vpop.permute.xlu0 %2242
  %2244 = vrot.lane.b32.xlu0 %v1919, 16
  %v2245 = vpop.permute.xlu0 %2244
  %2246 = vrot.lane.b32.xlu0 %v1920, 16
  %v2247 = vpop.permute.xlu0 %2246
  %2248 = vrot.lane.b32.xlu0 %v1921, 16
  %v2249 = vpop.permute.xlu0 %2248
  %2250 = vrot.lane.b32.xlu0 %v1922, 16
  %v2251 = vpop.permute.xlu0 %2250
  %2252 = vrot.lane.b32.xlu0 %v2212, 16
  %v2253 = vpop.permute.xlu0 %2252
  %2254 = vrot.lane.b32.xlu0 %v2213, 16
  %v2255 = vpop.permute.xlu0 %2254
  %2256 = vrot.lane.b32.xlu0 %v2214, 16
  %v2257 = vpop.permute.xlu0 %2256
  %2258 = vrot.lane.b32.xlu0 %v2215, 16
  %v2259 = vpop.permute.xlu0 %2258
  %2260 = vrot.lane.b32.xlu0 %v2216, 16
  %v2261 = vpop.permute.xlu0 %2260
  %2262 = vrot.lane.b32.xlu0 %v2217, 16
  %v2263 = vpop.permute.xlu0 %2262
  %2264 = vrot.lane.b32.xlu0 %v2218, 16
  %v2265 = vpop.permute.xlu0 %2264
  %2266 = vrot.lane.b32.xlu0 %v2219, 16
  %v2267 = vpop.permute.xlu0 %2266
  %2284 = vrot.lane.b32.xlu0 %v1915, 32
  %v2285 = vpop.permute.xlu0 %2284
  %2286 = vrot.lane.b32.xlu0 %v1916, 32
  %v2287 = vpop.permute.xlu0 %2286
  %2288 = vrot.lane.b32.xlu0 %v1917, 32
  %v2289 = vpop.permute.xlu0 %2288
  %2290 = vrot.lane.b32.xlu0 %v1918, 32
  %v2291 = vpop.permute.xlu0 %2290
  %2292 = vrot.lane.b32.xlu0 %v1919, 32
  %v2293 = vpop.permute.xlu0 %2292
  %2294 = vrot.lane.b32.xlu0 %v1920, 32
  %v2295 = vpop.permute.xlu0 %2294
  %2296 = vrot.lane.b32.xlu0 %v1921, 32
  %v2297 = vpop.permute.xlu0 %2296
  %2298 = vrot.lane.b32.xlu0 %v1922, 32
  %v2299 = vpop.permute.xlu0 %2298
  %2300 = vrot.lane.b32.xlu0 %v2212, 32
  %v2301 = vpop.permute.xlu0 %2300
  %2302 = vrot.lane.b32.xlu0 %v2213, 32
  %v2303 = vpop.permute.xlu0 %2302
  %2304 = vrot.lane.b32.xlu0 %v2214, 32
  %v2305 = vpop.permute.xlu0 %2304
  %2306 = vrot.lane.b32.xlu0 %v2215, 32
  %v2307 = vpop.permute.xlu0 %2306
  %2308 = vrot.lane.b32.xlu0 %v2216, 32
  %v2309 = vpop.permute.xlu0 %2308
  %2310 = vrot.lane.b32.xlu0 %v2217, 32
  %v2311 = vpop.permute.xlu0 %2310
  %2312 = vrot.lane.b32.xlu0 %v2218, 32
  %v2313 = vpop.permute.xlu0 %2312
  %2314 = vrot.lane.b32.xlu0 %v2219, 32
  %v2315 = vpop.permute.xlu0 %2314
  %2332 = vrot.lane.b32.xlu0 %v1915, 48
  %v2333 = vpop.permute.xlu0 %2332
  %2334 = vrot.lane.b32.xlu0 %v1916, 48
  %v2335 = vpop.permute.xlu0 %2334
  %2336 = vrot.lane.b32.xlu0 %v1917, 48
  %v2337 = vpop.permute.xlu0 %2336
  %2338 = vrot.lane.b32.xlu0 %v1918, 48
  %v2339 = vpop.permute.xlu0 %2338
  %2340 = vrot.lane.b32.xlu0 %v1919, 48
  %v2341 = vpop.permute.xlu0 %2340
  %2342 = vrot.lane.b32.xlu0 %v1920, 48
  %v2343 = vpop.permute.xlu0 %2342
  %2344 = vrot.lane.b32.xlu0 %v1921, 48
  %v2345 = vpop.permute.xlu0 %2344
  %2346 = vrot.lane.b32.xlu0 %v1922, 48
  %v2347 = vpop.permute.xlu0 %2346
  %2348 = vrot.lane.b32.xlu0 %v2212, 48
  %v2349 = vpop.permute.xlu0 %2348
  %2350 = vrot.lane.b32.xlu0 %v2213, 48
  %v2351 = vpop.permute.xlu0 %2350
  %2352 = vrot.lane.b32.xlu0 %v2214, 48
  %v2353 = vpop.permute.xlu0 %2352
  %2354 = vrot.lane.b32.xlu0 %v2215, 48
  %v2355 = vpop.permute.xlu0 %2354
  %2356 = vrot.lane.b32.xlu0 %v2216, 48
  %v2357 = vpop.permute.xlu0 %2356
  %2358 = vrot.lane.b32.xlu0 %v2217, 48
  %v2359 = vpop.permute.xlu0 %2358
  %2360 = vrot.lane.b32.xlu0 %v2218, 48
  %v2361 = vpop.permute.xlu0 %2360
  %2362 = vrot.lane.b32.xlu0 %v2219, 48
  %v2363 = vpop.permute.xlu0 %2362
  %v2380 = vsel %vm1914, %v1915, %v2237
  %v2381 = vsel %vm1914, %v1916, %v2239
  %v2382 = vsel %vm1914, %v1917, %v2241
  %v2383 = vsel %vm1914, %v1918, %v2243
  %v2384 = vsel %vm1914, %v1919, %v2245
  %v2385 = vsel %vm1914, %v1920, %v2247
  %v2386 = vsel %vm1914, %v1921, %v2249
  %v2387 = vsel %vm1914, %v1922, %v2251
  %v2388 = vsel %vm1914, %v2212, %v2253
  %v2389 = vsel %vm1914, %v2213, %v2255
  %v2390 = vsel %vm1914, %v2214, %v2257
  %v2391 = vsel %vm1914, %v2215, %v2259
  %v2392 = vsel %vm1914, %v2216, %v2261
  %v2393 = vsel %vm1914, %v2217, %v2263
  %v2394 = vsel %vm1914, %v2218, %v2265
  %v2395 = vsel %vm1914, %v2219, %v2267
  %v2396 = vsel %vm63, %v2380, %v2285
  %v2397 = vsel %vm63, %v2381, %v2287
  %v2398 = vsel %vm63, %v2382, %v2289
  %v2399 = vsel %vm63, %v2383, %v2291
  %v2400 = vsel %vm63, %v2384, %v2293
  %v2401 = vsel %vm63, %v2385, %v2295
  %v2402 = vsel %vm63, %v2386, %v2297
  %v2403 = vsel %vm63, %v2387, %v2299
  %v2404 = vsel %vm63, %v2388, %v2301
  %v2405 = vsel %vm63, %v2389, %v2303
  %v2406 = vsel %vm63, %v2390, %v2305
  %v2407 = vsel %vm63, %v2391, %v2307
  %v2408 = vsel %vm63, %v2392, %v2309
  %v2409 = vsel %vm63, %v2393, %v2311
  %v2410 = vsel %vm63, %v2394, %v2313
  %v2411 = vsel %vm63, %v2395, %v2315
  %vm2412 = vcmask 392192
  %v2413 = vsel %vm2412, %v2396, %v2333
  %v2414 = vsel %vm2412, %v2397, %v2335
  %v2415 = vsel %vm2412, %v2398, %v2337
  %v2416 = vsel %vm2412, %v2399, %v2339
  %v2417 = vsel %vm2412, %v2400, %v2341
  %v2418 = vsel %vm2412, %v2401, %v2343
  %v2419 = vsel %vm2412, %v2402, %v2345
  %v2420 = vsel %vm2412, %v2403, %v2347
  %v2421 = vsel %vm2412, %v2404, %v2349
  %v2422 = vsel %vm2412, %v2405, %v2351
  %v2423 = vsel %vm2412, %v2406, %v2353
  %v2424 = vsel %vm2412, %v2407, %v2355
  %v2425 = vsel %vm2412, %v2408, %v2357
  %v2426 = vsel %vm2412, %v2409, %v2359
  %v2427 = vsel %vm2412, %v2410, %v2361
  %v2428 = vsel %vm2412, %v2411, %v2363
  %2429 = vrot.lane.b32.xlu0 %v1915, 112
  %v2430 = vpop.permute.xlu0 %2429
  %2431 = vrot.lane.b32.xlu0 %v1916, 112
  %v2432 = vpop.permute.xlu0 %2431
  %2433 = vrot.lane.b32.xlu0 %v1917, 112
  %v2434 = vpop.permute.xlu0 %2433
  %2435 = vrot.lane.b32.xlu0 %v1918, 112
  %v2436 = vpop.permute.xlu0 %2435
  %2437 = vrot.lane.b32.xlu0 %v1919, 112
  %v2438 = vpop.permute.xlu0 %2437
  %2439 = vrot.lane.b32.xlu0 %v1920, 112
  %v2440 = vpop.permute.xlu0 %2439
  %2441 = vrot.lane.b32.xlu0 %v1921, 112
  %v2442 = vpop.permute.xlu0 %2441
  %2443 = vrot.lane.b32.xlu0 %v1922, 112
  %v2444 = vpop.permute.xlu0 %2443
  %2445 = vrot.lane.b32.xlu0 %v2212, 112
  %v2446 = vpop.permute.xlu0 %2445
  %2447 = vrot.lane.b32.xlu0 %v2213, 112
  %v2448 = vpop.permute.xlu0 %2447
  %2449 = vrot.lane.b32.xlu0 %v2214, 112
  %v2450 = vpop.permute.xlu0 %2449
  %2451 = vrot.lane.b32.xlu0 %v2215, 112
  %v2452 = vpop.permute.xlu0 %2451
  %2453 = vrot.lane.b32.xlu0 %v2216, 112
  %v2454 = vpop.permute.xlu0 %2453
  %2455 = vrot.lane.b32.xlu0 %v2217, 112
  %v2456 = vpop.permute.xlu0 %2455
  %2457 = vrot.lane.b32.xlu0 %v2218, 112
  %v2458 = vpop.permute.xlu0 %2457
  %2459 = vrot.lane.b32.xlu0 %v2219, 112
  %v2460 = vpop.permute.xlu0 %2459
  %v2477 = vsel %vm1914, %v2430, %v1915
  %v2478 = vsel %vm1914, %v2432, %v1916
  %v2479 = vsel %vm1914, %v2434, %v1917
  %v2480 = vsel %vm1914, %v2436, %v1918
  %v2481 = vsel %vm1914, %v2438, %v1919
  %v2482 = vsel %vm1914, %v2440, %v1920
  %v2483 = vsel %vm1914, %v2442, %v1921
  %v2484 = vsel %vm1914, %v2444, %v1922
  %v2485 = vsel %vm1914, %v2446, %v2212
  %v2486 = vsel %vm1914, %v2448, %v2213
  %v2487 = vsel %vm1914, %v2450, %v2214
  %v2488 = vsel %vm1914, %v2452, %v2215
  %v2489 = vsel %vm1914, %v2454, %v2216
  %v2490 = vsel %vm1914, %v2456, %v2217
  %v2491 = vsel %vm1914, %v2458, %v2218
  %v2492 = vsel %vm1914, %v2460, %v2219
  %v2493 = vsel %vm63, %v2477, %v2237
  %v2494 = vsel %vm63, %v2478, %v2239
  %v2495 = vsel %vm63, %v2479, %v2241
  %v2496 = vsel %vm63, %v2480, %v2243
  %v2497 = vsel %vm63, %v2481, %v2245
  %v2498 = vsel %vm63, %v2482, %v2247
  %v2499 = vsel %vm63, %v2483, %v2249
  %v2500 = vsel %vm63, %v2484, %v2251
  %v2501 = vsel %vm63, %v2485, %v2253
  %v2502 = vsel %vm63, %v2486, %v2255
  %v2503 = vsel %vm63, %v2487, %v2257
  %v2504 = vsel %vm63, %v2488, %v2259
  %v2505 = vsel %vm63, %v2489, %v2261
  %v2506 = vsel %vm63, %v2490, %v2263
  %v2507 = vsel %vm63, %v2491, %v2265
  %v2508 = vsel %vm63, %v2492, %v2267
  %v2509 = vsel %vm2412, %v2493, %v2285
  %v2510 = vsel %vm2412, %v2494, %v2287
  %v2511 = vsel %vm2412, %v2495, %v2289
  %v2512 = vsel %vm2412, %v2496, %v2291
  %v2513 = vsel %vm2412, %v2497, %v2293
  %v2514 = vsel %vm2412, %v2498, %v2295
  %v2515 = vsel %vm2412, %v2499, %v2297
  %v2516 = vsel %vm2412, %v2500, %v2299
  %v2517 = vsel %vm2412, %v2501, %v2301
  %v2518 = vsel %vm2412, %v2502, %v2303
  %v2519 = vsel %vm2412, %v2503, %v2305
  %v2520 = vsel %vm2412, %v2504, %v2307
  %v2521 = vsel %vm2412, %v2505, %v2309
  %v2522 = vsel %vm2412, %v2506, %v2311
  %v2523 = vsel %vm2412, %v2507, %v2313
  %v2524 = vsel %vm2412, %v2508, %v2315
  %v2525 = vmul.f32 %v397, %v2413
  %v2526 = vmul.f32 %v402, %v2414
  %v2527 = vmul.f32 %v407, %v2415
  %v2528 = vmul.f32 %v412, %v2416
  %v2529 = vmul.f32 %v417, %v2417
  %v2530 = vmul.f32 %v422, %v2418
  %v2531 = vmul.f32 %v427, %v2419
  %v2532 = vmul.f32 %v432, %v2420
  %v2533 = vmul.f32 %v437, %v2421
  %v2534 = vmul.f32 %v442, %v2422
  %v2535 = vmul.f32 %v447, %v2423
  %v2536 = vmul.f32 %v452, %v2424
  %v2537 = vmul.f32 %v457, %v2425
  %v2538 = vmul.f32 %v462, %v2426
  %v2539 = vmul.f32 %v467, %v2427
  %v2540 = vmul.f32 %v472, %v2428
  %v2541 = vmul.f32 %v397, %v2509
  %v2542 = vmul.f32 %v402, %v2510
  %v2543 = vmul.f32 %v407, %v2511
  %v2544 = vmul.f32 %v412, %v2512
  %v2545 = vmul.f32 %v417, %v2513
  %v2546 = vmul.f32 %v422, %v2514
  %v2547 = vmul.f32 %v427, %v2515
  %v2548 = vmul.f32 %v432, %v2516
  %v2549 = vmul.f32 %v437, %v2517
  %v2550 = vmul.f32 %v442, %v2518
  %v2551 = vmul.f32 %v447, %v2519
  %v2552 = vmul.f32 %v452, %v2520
  %v2553 = vmul.f32 %v457, %v2521
  %v2554 = vmul.f32 %v462, %v2522
  %v2555 = vmul.f32 %v467, %v2523
  %v2556 = vmul.f32 %v472, %v2524
  %2573 = vrot.lane.b32.xlu0 %v2541, 64
  %v2574 = vpop.permute.xlu0 %2573
  %2575 = vrot.lane.b32.xlu0 %v2542, 64
  %v2576 = vpop.permute.xlu0 %2575
  %2577 = vrot.lane.b32.xlu0 %v2543, 64
  %v2578 = vpop.permute.xlu0 %2577
  %2579 = vrot.lane.b32.xlu0 %v2544, 64
  %v2580 = vpop.permute.xlu0 %2579
  %2581 = vrot.lane.b32.xlu0 %v2545, 64
  %v2582 = vpop.permute.xlu0 %2581
  %2583 = vrot.lane.b32.xlu0 %v2546, 64
  %v2584 = vpop.permute.xlu0 %2583
  %2585 = vrot.lane.b32.xlu0 %v2547, 64
  %v2586 = vpop.permute.xlu0 %2585
  %2587 = vrot.lane.b32.xlu0 %v2548, 64
  %v2588 = vpop.permute.xlu0 %2587
  %2589 = vrot.lane.b32.xlu0 %v2549, 64
  %v2590 = vpop.permute.xlu0 %2589
  %2591 = vrot.lane.b32.xlu0 %v2550, 64
  %v2592 = vpop.permute.xlu0 %2591
  %2593 = vrot.lane.b32.xlu0 %v2551, 64
  %v2594 = vpop.permute.xlu0 %2593
  %2595 = vrot.lane.b32.xlu0 %v2552, 64
  %v2596 = vpop.permute.xlu0 %2595
  %2597 = vrot.lane.b32.xlu0 %v2553, 64
  %v2598 = vpop.permute.xlu0 %2597
  %2599 = vrot.lane.b32.xlu0 %v2554, 64
  %v2600 = vpop.permute.xlu0 %2599
  %2601 = vrot.lane.b32.xlu0 %v2555, 64
  %v2602 = vpop.permute.xlu0 %2601
  %2603 = vrot.lane.b32.xlu0 %v2556, 64
  %v2604 = vpop.permute.xlu0 %2603
  %v2621 = vsel %vm760, %v2525, %v2574
  %v2622 = vsel %vm760, %v2526, %v2576
  %v2623 = vsel %vm760, %v2527, %v2578
  %v2624 = vsel %vm760, %v2528, %v2580
  %v2625 = vsel %vm760, %v2529, %v2582
  %v2626 = vsel %vm760, %v2530, %v2584
  %v2627 = vsel %vm760, %v2531, %v2586
  %v2628 = vsel %vm760, %v2532, %v2588
  %v2629 = vsel %vm760, %v2533, %v2590
  %v2630 = vsel %vm760, %v2534, %v2592
  %v2631 = vsel %vm760, %v2535, %v2594
  %v2632 = vsel %vm760, %v2536, %v2596
  %v2633 = vsel %vm760, %v2537, %v2598
  %v2634 = vsel %vm760, %v2538, %v2600
  %v2635 = vsel %vm760, %v2539, %v2602
  %v2636 = vsel %vm760, %v2540, %v2604
  %v2637 = vld [vmem:[%s6] sm:$0xff]
  %v2638 = vld [vmem:[%s6 + $0x8] sm:$0xff]
  %v2639 = vld [vmem:[%s6 + $0x10] sm:$0xff]
  %v2640 = vld [vmem:[%s6 + $0x18] sm:$0xff]
  %v2641 = vld [vmem:[%s6 + $0x20] sm:$0xff]
  %v2642 = vld [vmem:[%s6 + $0x28] sm:$0xff]
  %v2643 = vld [vmem:[%s6 + $0x30] sm:$0xff]
  %v2644 = vld [vmem:[%s6 + $0x38] sm:$0xff]
  %v2645 = vld [vmem:[%s6 + $0x40] sm:$0xff]
  %v2646 = vld [vmem:[%s6 + $0x48] sm:$0xff]
  %v2647 = vld [vmem:[%s6 + $0x50] sm:$0xff]
  %v2648 = vld [vmem:[%s6 + $0x58] sm:$0xff]
  %v2649 = vld [vmem:[%s6 + $0x60] sm:$0xff]
  %v2650 = vld [vmem:[%s6 + $0x68] sm:$0xff]
  %v2651 = vld [vmem:[%s6 + $0x70] sm:$0xff]
  %v2652 = vld [vmem:[%s6 + $0x78] sm:$0xff]
  %v2653 = vld [vmem:[%s7] sm:$0x1]
  %v2655 = vlaneseq
  %v2656 = vshrl.u32 %v2655, 7
  %v2657 = vsub.s32 0, %v2656
  %v2658 = vrot.slane %v2653, %v2657
  %2660 = vmatprep.subr.mxu0 0.0
  %2661 = vmatpush1.msra.mxu0 %v2637
  %2662 = vmatprep.subr.mxu0 0.0
  %2663 = vmatpush1.msra.mxu0 %v2638
  %2664 = vmatprep.subr.mxu0 0.0
  %2665 = vmatpush1.msra.mxu0 %v2639
  %2666 = vmatprep.subr.mxu0 0.0
  %2667 = vmatpush1.msra.mxu0 %v2640
  %2668 = vmatprep.subr.mxu0 0.0
  %2669 = vmatpush1.msra.mxu0 %v2641
  %2670 = vmatprep.subr.mxu0 0.0
  %2671 = vmatpush1.msra.mxu0 %v2642
  %2672 = vmatprep.subr.mxu0 0.0
  %2673 = vmatpush1.msra.mxu0 %v2643
  %2674 = vmatprep.subr.mxu0 0.0
  %2675 = vmatpush1.msra.mxu0 %v2644
  %2676 = vmatprep.subr.mxu0 0.0
  %2677 = vmatpush1.msra.mxu0 %v2645
  %2678 = vmatprep.subr.mxu0 0.0
  %2679 = vmatpush1.msra.mxu0 %v2646
  %2680 = vmatprep.subr.mxu0 0.0
  %2681 = vmatpush1.msra.mxu0 %v2647
  %2682 = vmatprep.subr.mxu0 0.0
  %2683 = vmatpush1.msra.mxu0 %v2648
  %2684 = vmatprep.subr.mxu0 0.0
  %2685 = vmatpush1.msra.mxu0 %v2649
  %2686 = vmatprep.subr.mxu0 0.0
  %2687 = vmatpush1.msra.mxu0 %v2650
  %2688 = vmatprep.subr.mxu0 0.0
  %2689 = vmatpush1.msra.mxu0 %v2651
  %2690 = vmatprep.subr.mxu0 0.0
  %2691 = vmatpush1.msra.mxu0 %v2652
  %2692 = vmatprep.subr.mxu0 0.0
  %2693 = vmatpush1.msra.mxu0 0.0
  %2694 = vmatprep.subr.mxu0 0.0
  %2695 = vmatpush1.msra.mxu0 0.0
  %2696 = vmatprep.subr.mxu0 0.0
  %2697 = vmatpush1.msra.mxu0 0.0
  %2698 = vmatprep.subr.mxu0 0.0
  %2699 = vmatpush1.msra.mxu0 0.0
  %2700 = vmatprep.subr.mxu0 0.0
  %2701 = vmatpush1.msra.mxu0 0.0
  %2702 = vmatprep.subr.mxu0 0.0
  %2703 = vmatpush1.msra.mxu0 0.0
  %2704 = vmatprep.subr.mxu0 0.0
  %2705 = vmatpush1.msra.mxu0 0.0
  %2706 = vmatprep.subr.mxu0 0.0
  %2707 = vmatpush1.msra.mxu0 0.0
  %2708 = vmatprep.subr.mxu0 0.0
  %2709 = vmatpush1.msra.mxu0 0.0
  %2710 = vmatprep.subr.mxu0 0.0
  %2711 = vmatpush1.msra.mxu0 0.0
  %2712 = vmatprep.subr.mxu0 0.0
  %2713 = vmatpush1.msra.mxu0 0.0
  %2714 = vmatprep.subr.mxu0 0.0
  %2715 = vmatpush1.msra.mxu0 0.0
  %2716 = vmatprep.subr.mxu0 0.0
  %2717 = vmatpush1.msra.mxu0 0.0
  %2718 = vmatprep.subr.mxu0 0.0
  %2719 = vmatpush1.msra.mxu0 0.0
  %2720 = vmatprep.subr.mxu0 0.0
  %2721 = vmatpush1.msra.mxu0 0.0
  %2722 = vmatprep.subr.mxu0 0.0
  %2723 = vmatpush1.msra.mxu0 0.0
  %2724 = vmatprep.mubr.f32.mxu0 0.0
  %2725 = vmatmul.mubr.f32.gmra.mrb[0].mxu0 %v2621
  %v2726 = vpop.f32.mrb[0].mxu0
  %v2727 = vadd.f32 %v2658, %v2726
  %v2728 = vpop.f32.mrb[0].mxu0
  %2729 = vmatprep.mubr.f32.mxu0 0.0
  %2730 = vmatmul.mubr.f32.gmra.mrb[0].mxu0 %v2622
  %v2731 = vpop.f32.mrb[0].mxu0
  %v2732 = vadd.f32 %v2658, %v2731
  %v2733 = vpop.f32.mrb[0].mxu0
  %2734 = vmatprep.mubr.f32.mxu0 0.0
  %2735 = vmatmul.mubr.f32.gmra.mrb[0].mxu0 %v2623
  %v2736 = vpop.f32.mrb[0].mxu0
  %v2737 = vadd.f32 %v2658, %v2736
  %v2738 = vpop.f32.mrb[0].mxu0
  %2739 = vmatprep.mubr.f32.mxu0 0.0
  %2740 = vmatmul.mubr.f32.gmra.mrb[0].mxu0 %v2624
  %v2741 = vpop.f32.mrb[0].mxu0
  %v2742 = vadd.f32 %v2658, %v2741
  %v2743 = vpop.f32.mrb[0].mxu0
  %2744 = vmatprep.mubr.f32.mxu0 0.0
  %2745 = vmatmul.mubr.f32.gmra.mrb[0].mxu0 %v2625
  %v2746 = vpop.f32.mrb[0].mxu0
  %v2747 = vadd.f32 %v2658, %v2746
  %v2748 = vpop.f32.mrb[0].mxu0
  %2749 = vmatprep.mubr.f32.mxu0 0.0
  %2750 = vmatmul.mubr.f32.gmra.mrb[0].mxu0 %v2626
  %v2751 = vpop.f32.mrb[0].mxu0
  %v2752 = vadd.f32 %v2658, %v2751
  %v2753 = vpop.f32.mrb[0].mxu0
  %2754 = vmatprep.mubr.f32.mxu0 0.0
  %2755 = vmatmul.mubr.f32.gmra.mrb[0].mxu0 %v2627
  %v2756 = vpop.f32.mrb[0].mxu0
  %v2757 = vadd.f32 %v2658, %v2756
  %v2758 = vpop.f32.mrb[0].mxu0
  %2759 = vmatprep.mubr.f32.mxu0 0.0
  %2760 = vmatmul.mubr.f32.gmra.mrb[0].mxu0 %v2628
  %v2761 = vpop.f32.mrb[0].mxu0
  %v2762 = vadd.f32 %v2658, %v2761
  %v2763 = vpop.f32.mrb[0].mxu0
  %2764 = vmatprep.mubr.f32.mxu0 0.0
  %2765 = vmatmul.mubr.f32.gmra.mrb[0].mxu0 %v2629
  %v2766 = vpop.f32.mrb[0].mxu0
  %v2767 = vadd.f32 %v2658, %v2766
  %v2768 = vpop.f32.mrb[0].mxu0
  %2769 = vmatprep.mubr.f32.mxu0 0.0
  %2770 = vmatmul.mubr.f32.gmra.mrb[0].mxu0 %v2630
  %v2771 = vpop.f32.mrb[0].mxu0
  %v2772 = vadd.f32 %v2658, %v2771
  %v2773 = vpop.f32.mrb[0].mxu0
  %2774 = vmatprep.mubr.f32.mxu0 0.0
  %2775 = vmatmul.mubr.f32.gmra.mrb[0].mxu0 %v2631
  %v2776 = vpop.f32.mrb[0].mxu0
  %v2777 = vadd.f32 %v2658, %v2776
  %v2778 = vpop.f32.mrb[0].mxu0
  %2779 = vmatprep.mubr.f32.mxu0 0.0
  %2780 = vmatmul.mubr.f32.gmra.mrb[0].mxu0 %v2632
  %v2781 = vpop.f32.mrb[0].mxu0
  %v2782 = vadd.f32 %v2658, %v2781
  %v2783 = vpop.f32.mrb[0].mxu0
  %2784 = vmatprep.mubr.f32.mxu0 0.0
  %2785 = vmatmul.mubr.f32.gmra.mrb[0].mxu0 %v2633
  %v2786 = vpop.f32.mrb[0].mxu0
  %v2787 = vadd.f32 %v2658, %v2786
  %v2788 = vpop.f32.mrb[0].mxu0
  %2789 = vmatprep.mubr.f32.mxu0 0.0
  %2790 = vmatmul.mubr.f32.gmra.mrb[0].mxu0 %v2634
  %v2791 = vpop.f32.mrb[0].mxu0
  %v2792 = vadd.f32 %v2658, %v2791
  %v2793 = vpop.f32.mrb[0].mxu0
  %2794 = vmatprep.mubr.f32.mxu0 0.0
  %2795 = vmatmul.mubr.f32.gmra.mrb[0].mxu0 %v2635
  %v2796 = vpop.f32.mrb[0].mxu0
  %v2797 = vadd.f32 %v2658, %v2796
  %v2798 = vpop.f32.mrb[0].mxu0
  %2799 = vmatprep.mubr.f32.mxu0 0.0
  %2800 = vmatmul.mubr.f32.gmra.mrb[0].mxu0 %v2636
  %v2801 = vpop.f32.mrb[0].mxu0
  %v2802 = vadd.f32 %v2658, %v2801
  %v2803 = vpop.f32.mrb[0].mxu0
  %2804 = vdwg.mxu0
  %v2805 = vmax.f32 %v2727, 0.0
  %v2806 = vmax.f32 %v2732, 0.0
  %v2807 = vmax.f32 %v2737, 0.0
  %v2808 = vmax.f32 %v2742, 0.0
  %v2809 = vmax.f32 %v2747, 0.0
  %v2810 = vmax.f32 %v2752, 0.0
  %v2811 = vmax.f32 %v2757, 0.0
  %v2812 = vmax.f32 %v2762, 0.0
  %v2813 = vmax.f32 %v2767, 0.0
  %v2814 = vmax.f32 %v2772, 0.0
  %v2815 = vmax.f32 %v2777, 0.0
  %v2816 = vmax.f32 %v2782, 0.0
  %v2817 = vmax.f32 %v2787, 0.0
  %v2818 = vmax.f32 %v2792, 0.0
  %v2819 = vmax.f32 %v2797, 0.0
  %v2820 = vmax.f32 %v2802, 0.0
  %v2821 = vld [vmem:[%s8] sm:$0xff]
  %v2822 = vld [vmem:[%s9] sm:$0x1]
  %v2824 = vlaneseq
  %v2825 = vshrl.u32 %v2824, 7
  %v2826 = vsub.s32 0, %v2825
  %v2827 = vrot.slane %v2822, %v2826
  %v2830 = vsel %vm281, %v2805, 0
  %v2833 = vsel %vm281, %v2806, 0
  %v2836 = vsel %vm281, %v2807, 0
  %v2839 = vsel %vm281, %v2808, 0
  %v2842 = vsel %vm281, %v2809, 0
  %v2845 = vsel %vm281, %v2810, 0
  %v2848 = vsel %vm281, %v2811, 0
  %v2851 = vsel %vm281, %v2812, 0
  %v2854 = vsel %vm281, %v2813, 0
  %v2857 = vsel %vm281, %v2814, 0
  %v2860 = vsel %vm281, %v2815, 0
  %v2863 = vsel %vm281, %v2816, 0
  %v2866 = vsel %vm281, %v2817, 0
  %v2869 = vsel %vm281, %v2818, 0
  %v2872 = vsel %vm281, %v2819, 0
  %v2875 = vsel %vm281, %v2820, 0
  %2877 = vmatprep.subr.mxu0 0.0
  %2878 = vmatpush1.msra.mxu0 %v2821
  %2879 = vmatprep.subr.mxu0 0.0
  %2880 = vmatpush1.msra.mxu0 0.0
  %2881 = vmatprep.subr.mxu0 0.0
  %2882 = vmatpush1.msra.mxu0 0.0
  %2883 = vmatprep.subr.mxu0 0.0
  %2884 = vmatpush1.msra.mxu0 0.0
  %2885 = vmatprep.subr.mxu0 0.0
  %2886 = vmatpush1.msra.mxu0 0.0
  %2887 = vmatprep.subr.mxu0 0.0
  %2888 = vmatpush1.msra.mxu0 0.0
  %2889 = vmatprep.subr.mxu0 0.0
  %2890 = vmatpush1.msra.mxu0 0.0
  %2891 = vmatprep.subr.mxu0 0.0
  %2892 = vmatpush1.msra.mxu0 0.0
  %2893 = vmatprep.subr.mxu0 0.0
  %2894 = vmatpush1.msra.mxu0 0.0
  %2895 = vmatprep.subr.mxu0 0.0
  %2896 = vmatpush1.msra.mxu0 0.0
  %2897 = vmatprep.subr.mxu0 0.0
  %2898 = vmatpush1.msra.mxu0 0.0
  %2899 = vmatprep.subr.mxu0 0.0
  %2900 = vmatpush1.msra.mxu0 0.0
  %2901 = vmatprep.subr.mxu0 0.0
  %2902 = vmatpush1.msra.mxu0 0.0
  %2903 = vmatprep.subr.mxu0 0.0
  %2904 = vmatpush1.msra.mxu0 0.0
  %2905 = vmatprep.subr.mxu0 0.0
  %2906 = vmatpush1.msra.mxu0 0.0
  %2907 = vmatprep.subr.mxu0 0.0
  %2908 = vmatpush1.msra.mxu0 0.0
  %2909 = vmatprep.subr.mxu0 0.0
  %2910 = vmatpush1.msra.mxu0 0.0
  %2911 = vmatprep.subr.mxu0 0.0
  %2912 = vmatpush1.msra.mxu0 0.0
  %2913 = vmatprep.subr.mxu0 0.0
  %2914 = vmatpush1.msra.mxu0 0.0
  %2915 = vmatprep.subr.mxu0 0.0
  %2916 = vmatpush1.msra.mxu0 0.0
  %2917 = vmatprep.subr.mxu0 0.0
  %2918 = vmatpush1.msra.mxu0 0.0
  %2919 = vmatprep.subr.mxu0 0.0
  %2920 = vmatpush1.msra.mxu0 0.0
  %2921 = vmatprep.subr.mxu0 0.0
  %2922 = vmatpush1.msra.mxu0 0.0
  %2923 = vmatprep.subr.mxu0 0.0
  %2924 = vmatpush1.msra.mxu0 0.0
  %2925 = vmatprep.subr.mxu0 0.0
  %2926 = vmatpush1.msra.mxu0 0.0
  %2927 = vmatprep.subr.mxu0 0.0
  %2928 = vmatpush1.msra.mxu0 0.0
  %2929 = vmatprep.subr.mxu0 0.0
  %2930 = vmatpush1.msra.mxu0 0.0
  %2931 = vmatprep.subr.mxu0 0.0
  %2932 = vmatpush1.msra.mxu0 0.0
  %2933 = vmatprep.subr.mxu0 0.0
  %2934 = vmatpush1.msra.mxu0 0.0
  %2935 = vmatprep.subr.mxu0 0.0
  %2936 = vmatpush1.msra.mxu0 0.0
  %2937 = vmatprep.subr.mxu0 0.0
  %2938 = vmatpush1.msra.mxu0 0.0
  %2939 = vmatprep.subr.mxu0 0.0
  %2940 = vmatpush1.msra.mxu0 0.0
  %2941 = vmatprep.mubr.f32.mxu0 0.0
  %2942 = vmatmul.mubr.f32.gmra.mrb[0].mxu0 %v2830
  %v2943 = vpop.f32.mrb[0].mxu0
  %v2944 = vadd.f32 %v2827, %v2943
  %v2945 = vpop.f32.mrb[0].mxu0
  %2946 = vmatprep.mubr.f32.mxu0 0.0
  %2947 = vmatmul.mubr.f32.gmra.mrb[0].mxu0 %v2833
  %v2948 = vpop.f32.mrb[0].mxu0
  %v2949 = vadd.f32 %v2827, %v2948
  %v2950 = vpop.f32.mrb[0].mxu0
  %2951 = vmatprep.mubr.f32.mxu0 0.0
  %2952 = vmatmul.mubr.f32.gmra.mrb[0].mxu0 %v2836
  %v2953 = vpop.f32.mrb[0].mxu0
  %v2954 = vadd.f32 %v2827, %v2953
  %v2955 = vpop.f32.mrb[0].mxu0
  %2956 = vmatprep.mubr.f32.mxu0 0.0
  %2957 = vmatmul.mubr.f32.gmra.mrb[0].mxu0 %v2839
  %v2958 = vpop.f32.mrb[0].mxu0
  %v2959 = vadd.f32 %v2827, %v2958
  %v2960 = vpop.f32.mrb[0].mxu0
  %2961 = vmatprep.mubr.f32.mxu0 0.0
  %2962 = vmatmul.mubr.f32.gmra.mrb[0].mxu0 %v2842
  %v2963 = vpop.f32.mrb[0].mxu0
  %v2964 = vadd.f32 %v2827, %v2963
  %v2965 = vpop.f32.mrb[0].mxu0
  %2966 = vmatprep.mubr.f32.mxu0 0.0
  %2967 = vmatmul.mubr.f32.gmra.mrb[0].mxu0 %v2845
  %v2968 = vpop.f32.mrb[0].mxu0
  %v2969 = vadd.f32 %v2827, %v2968
  %v2970 = vpop.f32.mrb[0].mxu0
  %2971 = vmatprep.mubr.f32.mxu0 0.0
  %2972 = vmatmul.mubr.f32.gmra.mrb[0].mxu0 %v2848
  %v2973 = vpop.f32.mrb[0].mxu0
  %v2974 = vadd.f32 %v2827, %v2973
  %v2975 = vpop.f32.mrb[0].mxu0
  %2976 = vmatprep.mubr.f32.mxu0 0.0
  %2977 = vmatmul.mubr.f32.gmra.mrb[0].mxu0 %v2851
  %v2978 = vpop.f32.mrb[0].mxu0
  %v2979 = vadd.f32 %v2827, %v2978
  %v2980 = vpop.f32.mrb[0].mxu0
  %2981 = vmatprep.mubr.f32.mxu0 0.0
  %2982 = vmatmul.mubr.f32.gmra.mrb[0].mxu0 %v2854
  %v2983 = vpop.f32.mrb[0].mxu0
  %v2984 = vadd.f32 %v2827, %v2983
  %v2985 = vpop.f32.mrb[0].mxu0
  %2986 = vmatprep.mubr.f32.mxu0 0.0
  %2987 = vmatmul.mubr.f32.gmra.mrb[0].mxu0 %v2857
  %v2988 = vpop.f32.mrb[0].mxu0
  %v2989 = vadd.f32 %v2827, %v2988
  %v2990 = vpop.f32.mrb[0].mxu0
  %2991 = vmatprep.mubr.f32.mxu0 0.0
  %2992 = vmatmul.mubr.f32.gmra.mrb[0].mxu0 %v2860
  %v2993 = vpop.f32.mrb[0].mxu0
  %v2994 = vadd.f32 %v2827, %v2993
  %v2995 = vpop.f32.mrb[0].mxu0
  %2996 = vmatprep.mubr.f32.mxu0 0.0
  %2997 = vmatmul.mubr.f32.gmra.mrb[0].mxu0 %v2863
  %v2998 = vpop.f32.mrb[0].mxu0
  %v2999 = vadd.f32 %v2827, %v2998
  %v3000 = vpop.f32.mrb[0].mxu0
  %3001 = vmatprep.mubr.f32.mxu0 0.0
  %3002 = vmatmul.mubr.f32.gmra.mrb[0].mxu0 %v2866
  %v3003 = vpop.f32.mrb[0].mxu0
  %v3004 = vadd.f32 %v2827, %v3003
  %v3005 = vpop.f32.mrb[0].mxu0
  %3006 = vmatprep.mubr.f32.mxu0 0.0
  %3007 = vmatmul.mubr.f32.gmra.mrb[0].mxu0 %v2869
  %v3008 = vpop.f32.mrb[0].mxu0
  %v3009 = vadd.f32 %v2827, %v3008
  %v3010 = vpop.f32.mrb[0].mxu0
  %3011 = vmatprep.mubr.f32.mxu0 0.0
  %3012 = vmatmul.mubr.f32.gmra.mrb[0].mxu0 %v2872
  %v3013 = vpop.f32.mrb[0].mxu0
  %v3014 = vadd.f32 %v2827, %v3013
  %v3015 = vpop.f32.mrb[0].mxu0
  %3016 = vmatprep.mubr.f32.mxu0 0.0
  %3017 = vmatmul.mubr.f32.gmra.mrb[0].mxu0 %v2875
  %v3018 = vpop.f32.mrb[0].mxu0
  %v3019 = vadd.f32 %v2827, %v3018
  %v3020 = vpop.f32.mrb[0].mxu0
  %3021 = vdwg.mxu0
  %v3022 = vadd.f32 %v2944, %v36
  %v3023 = vadd.f32 %v2949, %v37
  %v3024 = vadd.f32 %v2954, %v38
  %v3025 = vadd.f32 %v2959, %v39
  %v3026 = vadd.f32 %v2964, %v40
  %v3027 = vadd.f32 %v2969, %v41
  %v3028 = vadd.f32 %v2974, %v42
  %v3029 = vadd.f32 %v2979, %v43
  %v3030 = vadd.f32 %v2984, %v44
  %v3031 = vadd.f32 %v2989, %v45
  %v3032 = vadd.f32 %v2994, %v46
  %v3033 = vadd.f32 %v2999, %v47
  %v3034 = vadd.f32 %v3004, %v48
  %v3035 = vadd.f32 %v3009, %v49
  %v3036 = vadd.f32 %v3014, %v50
  %v3037 = vadd.f32 %v3019, %v51
  %v3038 = vmax.f32 %v3022, 0.0
  %v3039 = vmax.f32 %v3023, 0.0
  %v3040 = vmax.f32 %v3024, 0.0
  %v3041 = vmax.f32 %v3025, 0.0
  %v3042 = vmax.f32 %v3026, 0.0
  %v3043 = vmax.f32 %v3027, 0.0
  %v3044 = vmax.f32 %v3028, 0.0
  %v3045 = vmax.f32 %v3029, 0.0
  %v3046 = vmax.f32 %v3030, 0.0
  %v3047 = vmax.f32 %v3031, 0.0
  %v3048 = vmax.f32 %v3032, 0.0
  %v3049 = vmax.f32 %v3033, 0.0
  %v3050 = vmax.f32 %v3034, 0.0
  %v3051 = vmax.f32 %v3035, 0.0
  %v3052 = vmax.f32 %v3036, 0.0
  %v3053 = vmax.f32 %v3037, 0.0
  %3054 = vst.msk [vmem:[%s10] sm:$0xff] %vm63, %v3038
  %3055 = vst.msk [vmem:[%s10 + $0x8] sm:$0xff] %vm63, %v3039
  %3056 = vst.msk [vmem:[%s10 + $0x10] sm:$0xff] %vm63, %v3040
  %3057 = vst.msk [vmem:[%s10 + $0x18] sm:$0xff] %vm63, %v3041
  %3058 = vst.msk [vmem:[%s10 + $0x20] sm:$0xff] %vm63, %v3042
  %3059 = vst.msk [vmem:[%s10 + $0x28] sm:$0xff] %vm63, %v3043
  %3060 = vst.msk [vmem:[%s10 + $0x30] sm:$0xff] %vm63, %v3044
  %3061 = vst.msk [vmem:[%s10 + $0x38] sm:$0xff] %vm63, %v3045
  %3062 = vst.msk [vmem:[%s10 + $0x40] sm:$0xff] %vm63, %v3046
  %3063 = vst.msk [vmem:[%s10 + $0x48] sm:$0xff] %vm63, %v3047
  %3064 = vst.msk [vmem:[%s10 + $0x50] sm:$0xff] %vm63, %v3048
  %3065 = vst.msk [vmem:[%s10 + $0x58] sm:$0xff] %vm63, %v3049
  %3066 = vst.msk [vmem:[%s10 + $0x60] sm:$0xff] %vm63, %v3050
  %3067 = vst.msk [vmem:[%s10 + $0x68] sm:$0xff] %vm63, %v3051
  %3068 = vst.msk [vmem:[%s10 + $0x70] sm:$0xff] %vm63, %v3052
  %3069 = vst.msk [vmem:[%s10 + $0x78] sm:$0xff] %vm63, %v3053
  // Predicated region
  $region42: #{tpu_custom_call.1} parent=0 // pred_check
    _
  $region43: #{tpu_custom_call.1} parent=0 // pred_check_branch
    %3071 = sbr.rel (0) target = $region45
  $region44: #{tpu_custom_call.1} parent=0 // pred_region
    _
  $region45: #{tpu_custom_call.1} parent=0 // pred_fallthru
    _
  // Predicated region
  $region46: #{tpu_custom_call.1} parent=0 // pred_check
    _
  $region47: #{tpu_custom_call.1} parent=0 // pred_check_branch
    %3073 = sbr.rel (0) target = $region49
  $region48: #{tpu_custom_call.1} parent=0 // pred_region
    _
  $region49: #{tpu_custom_call.1} parent=0 // pred_fallthru
    _

</llo_original>
